<compile_context>
chip_gen: v7x
topology: tpu7x:2x2x1
jax: 0.10.0
libtpu: 0.0.40
codegen_flags: <defaults>
</compile_context>

<pallas_src>
import math
import jax
import jax.numpy as jnp
from jax.experimental import pallas as pl
from jax.experimental.pallas import tpu as pltpu


def make_positional_encoding(seq_len, d_model):
    position = jnp.arange(seq_len, dtype=jnp.float32)[:, None]
    div_term = jnp.exp(jnp.arange(0, d_model, 2, dtype=jnp.float32)
                       * (-math.log(10000.0) / d_model))
    ang = position * div_term                       # [S, d_model//2]
    pe = jnp.zeros((seq_len, d_model), jnp.float32)
    pe = pe.at[:, 0::2].set(jnp.sin(ang)).at[:, 1::2].set(jnp.cos(ang))
    return pe


def init_params(key, d_model, d_out, num_classes, max_m):
    ks = jax.random.split(key, 14)
    s = 0.1
    fin = d_model * d_out * max_m
    return {
        "w1": s * jax.random.normal(ks[0], (3, d_model, 32), jnp.float32),
        "b1": s * jax.random.normal(ks[1], (1, 32), jnp.float32),
        "w2": s * jax.random.normal(ks[2], (32, 64), jnp.float32),
        "b2": s * jax.random.normal(ks[3], (1, 64), jnp.float32),
        "w3": s * jax.random.normal(ks[4], (64, d_out), jnp.float32),
        "b3": s * jax.random.normal(ks[5], (1, d_out), jnp.float32),
        "gamma": 1.0 + s * jax.random.normal(ks[6], (1, d_out), jnp.float32),
        "beta": s * jax.random.normal(ks[7], (1, d_out), jnp.float32),
        "l1": s * jax.random.normal(ks[8], (fin, 32), jnp.float32),
        "bl1": s * jax.random.normal(ks[9], (1, 32), jnp.float32),
        "l2": s * jax.random.normal(ks[10], (32, 8), jnp.float32),
        "bl2": s * jax.random.normal(ks[11], (1, 8), jnp.float32),
        "l3": s * jax.random.normal(ks[12], (8, num_classes), jnp.float32),
        "bl3": s * jax.random.normal(ks[13], (1, num_classes), jnp.float32),
    }


def complor_forward(x, seq_len, params):
    """Fused single-launch Pallas forward of complor_network (eval mode)."""
    B, S, D = x.shape
    d_out = params["w3"].shape[1]
    num_classes = params["l3"].shape[1]
    fin = params["l1"].shape[0]
    assert fin == d_out * D, "classifier input size implies max_m == 1 (as in the torch flatten)"
    So = S - 2                      # Conv1d(k=3, stride=1) output length per example
    R = B * S - 2                   # batch-flattened conv rows (cross-batch rows are masked out)

    # host-side layout plumbing (constant-folded / fused into one tiny prep fusion under jit)
    pe = make_positional_encoding(S, D)
    xf = x.reshape(B * S, D)                       # free row-major view
    pef = jnp.tile(pe, (B, 1))                     # pe table repeated per batch block
    # one-hot "flatten" operators:  (hn @ smat)[r, j] == hn[r, j // D]
    #                               (pool @ qmat)[r, j] == pool[r, j % D]
    j = jnp.arange(fin)
    smat = (j[None, :] // D == jnp.arange(d_out)[:, None]).astype(jnp.float32)   # [d_out, fin]
    qmat = (j[None, :] % D == jnp.arange(D)[:, None]).astype(jnp.float32)        # [D, fin]
    # per-example segment selector; also carries the 1/seq_len scaling of the pooling branch
    r = jnp.arange(R)
    b_idx = jnp.arange(B)[:, None]
    seg = ((r[None, :] >= b_idx * S) & (r[None, :] < b_idx * S + So)).astype(jnp.float32)
    seg = seg * (1.0 / seq_len.astype(jnp.float32))[:, None]                     # [B, R]

    def kernel(xf_ref, pef_ref, w1_ref, b1_ref, w2_ref, b2_ref, w3_ref, b3_ref,
               g_ref, bt_ref, smat_ref, qmat_ref, seg_ref,
               l1_ref, bl1_ref, l2_ref, bl2_ref, l3_ref, bl3_ref, out_ref):
        # TODO(synk): nn.Dropout(0.1) inside PositionalEncoding is eval-mode identity.
        xv = xf_ref[...]                                  # [B*S, D] raw input, batch-flattened
        pv = pef_ref[...]                                 # [B*S, D] positional encoding
        # the 3 shifted taps are built ONCE and shared by the conv and pooling branches
        t0, t1, t2 = xv[0:R], xv[1:R + 1], xv[2:R + 2]    # [R, D] each
        pool = t0 + t1 + t2                               # AvgPool1d(3)*motif_size(3) on raw x
        # Conv1d(D -> 32, k=3) for the whole batch at once (R = B*S-2 rows, no grid loop).
        # NOTE: kept as 3 accumulated MXU pushes over the shared taps instead of a
        # materialized [R, 3D] im2col slab: the push-count difference is immaterial at
        # these shapes and this avoids unaligned lane concat/stores entirely.
        h = (jnp.dot(t0 + pv[0:R], w1_ref[0], preferred_element_type=jnp.float32)
             + jnp.dot(t1 + pv[1:R + 1], w1_ref[1], preferred_element_type=jnp.float32)
             + jnp.dot(t2 + pv[2:R + 2], w1_ref[2], preferred_element_type=jnp.float32)
             + b1_ref[...])
        h = jnp.maximum(h, 0.0)
        # Conv1d(32 -> 64, k=1) and Conv1d(64 -> d_out, k=1) == plain matmuls
        h = jnp.maximum(jnp.dot(h, w2_ref[...], preferred_element_type=jnp.float32)
                        + b2_ref[...], 0.0)
        hc = jnp.dot(h, w3_ref[...], preferred_element_type=jnp.float32) + b3_ref[...]
        # LayerNorm over d_out (eps=1e-5, affine)
        mu = jnp.mean(hc, axis=-1, keepdims=True)
        var = jnp.mean(jnp.square(hc - mu), axis=-1, keepdims=True)
        hn = (hc - mu) * jax.lax.rsqrt(var + 1e-5) * g_ref[...] + bt_ref[...]    # [R, d_out]
        # heat map + torch reshape->permute(0,2,3,1)->Flatten fused into 3 matmuls:
        #   feat[b, o*D + m] = (1/seq_len[b]) * sum_t hn[b, t, o] * pool[b, t, m]
        # (the invalid cross-batch rows are zeroed by the segment matrix), emitted
        # directly as a lane-dense [B, fin] slab that stays in VMEM.
        hs = jnp.dot(hn, smat_ref[...], preferred_element_type=jnp.float32)      # hn[r, j//D]
        pq = jnp.dot(pool, qmat_ref[...], preferred_element_type=jnp.float32)    # pool[r, j%D]
        feat = jnp.dot(seg_ref[...], hs * pq, preferred_element_type=jnp.float32)  # [B, fin]
        # classifier MLP on the whole batch
        z = jnp.maximum(jnp.dot(feat, l1_ref[...], preferred_element_type=jnp.float32)
                        + bl1_ref[...], 0.0)
        z = jnp.maximum(jnp.dot(z, l2_ref[...], preferred_element_type=jnp.float32)
                        + bl2_ref[...], 0.0)
        out_ref[...] = (jnp.dot(z, l3_ref[...], preferred_element_type=jnp.float32)
                        + bl3_ref[...])

    inputs = (xf, pef, params["w1"], params["b1"], params["w2"], params["b2"],
              params["w3"], params["b3"], params["gamma"], params["beta"],
              smat, qmat, seg,
              params["l1"], params["bl1"], params["l2"], params["bl2"],
              params["l3"], params["bl3"])

    flops = int(2 * R * (3 * D * 32 + 32 * 64 + 64 * d_out)        # conv stack
                + 2 * R * fin * (d_out + D) + 2 * B * R * fin      # heat map / flatten
                + 2 * B * (fin * 32 + 32 * 8 + 8 * num_classes))   # classifier
    bytes_accessed = int(4 * (sum(int(a.size) for a in inputs) + B * num_classes))

    # TODO(synk): at production S/D, tile the row axis (2-row halo) with a grid and
    # store activations/weights in bf16 (f32 accumulate) — irrelevant at these sizes.
    return pl.pallas_call(
        kernel,
        out_shape=jax.ShapeDtypeStruct((B, num_classes), jnp.float32),
        in_specs=[pl.BlockSpec(memory_space=pltpu.MemorySpace.VMEM)] * len(inputs),
        out_specs=pl.BlockSpec(memory_space=pltpu.MemorySpace.VMEM),
        cost_estimate=pl.CostEstimate(flops=flops, transcendentals=R,
                                      bytes_accessed=bytes_accessed),
    )(*inputs)


def reference_forward(x, seq_len, params):
    # pure-JAX reference of the torch forward (eval mode)
    B, S, D = x.shape
    pe = make_positional_encoding(S, D)
    x_pe = x + pe[None]
    So = S - 2
    h = jnp.zeros((B, So, 32), jnp.float32)
    for k in range(3):
        h = h + jnp.einsum("bsd,do->bso", x_pe[:, k:k + So], params["w1"][k])
    h = jax.nn.relu(h + params["b1"])
    h = jax.nn.relu(jnp.einsum("bso,oh->bsh", h, params["w2"]) + params["b2"])
    hc = jnp.einsum("bsh,ho->bso", h, params["w3"]) + params["b3"]
    mu = hc.mean(-1, keepdims=True)
    var = ((hc - mu) ** 2).mean(-1, keepdims=True)
    hn = (hc - mu) / jnp.sqrt(var + 1e-5) * params["gamma"] + params["beta"]
    ps = (x[:, 0:So] + x[:, 1:So + 1] + x[:, 2:So + 2]) / seq_len[:, None, None]
    heat = jnp.einsum("btm,bto->bmo", ps, hn)
    feat = jnp.transpose(heat, (0, 2, 1)).reshape(B, -1)
    z = jax.nn.relu(feat @ params["l1"] + params["bl1"])
    z = jax.nn.relu(z @ params["l2"] + params["bl2"])
    return z @ params["l3"] + params["bl3"]


if __name__ == "__main__":
    B, S, d_model, d_out, num_classes, max_m = 2, 16, 8, 8, 3, 1
    key = jax.random.PRNGKey(0)
    kx, kp = jax.random.split(key)
    x = jax.random.normal(kx, (B, S, d_model), jnp.float32)
    seq_len = jnp.array([16.0, 12.0], jnp.float32)   # per-example sequence lengths
    params = init_params(kp, d_model, d_out, num_classes, max_m)

    out = jax.block_until_ready(jax.jit(complor_forward)(x, seq_len, params))

    ref = reference_forward(x, seq_len, params)
    assert out.shape == (B, num_classes)
    assert jnp.allclose(out, ref, atol=1e-2, rtol=1e-2), (out, ref)
    print("KERNEL_OK")
</pallas_src>

<mosaic_0001>
module attributes {stable_mosaic.version = 11 : i64} {
  func.func @kernel(%arg0: memref<32x8xf32, #tpu.memory_space<vmem>>, %arg1: memref<32x8xf32, #tpu.memory_space<vmem>>, %arg2: memref<3x8x32xf32, #tpu.memory_space<vmem>>, %arg3: memref<1x32xf32, #tpu.memory_space<vmem>>, %arg4: memref<32x64xf32, #tpu.memory_space<vmem>>, %arg5: memref<1x64xf32, #tpu.memory_space<vmem>>, %arg6: memref<64x8xf32, #tpu.memory_space<vmem>>, %arg7: memref<1x8xf32, #tpu.memory_space<vmem>>, %arg8: memref<1x8xf32, #tpu.memory_space<vmem>>, %arg9: memref<1x8xf32, #tpu.memory_space<vmem>>, %arg10: memref<8x64xf32, #tpu.memory_space<vmem>>, %arg11: memref<8x64xf32, #tpu.memory_space<vmem>>, %arg12: memref<2x30xf32, #tpu.memory_space<vmem>>, %arg13: memref<64x32xf32, #tpu.memory_space<vmem>>, %arg14: memref<1x32xf32, #tpu.memory_space<vmem>>, %arg15: memref<32x8xf32, #tpu.memory_space<vmem>>, %arg16: memref<1x8xf32, #tpu.memory_space<vmem>>, %arg17: memref<8x3xf32, #tpu.memory_space<vmem>>, %arg18: memref<1x3xf32, #tpu.memory_space<vmem>>, %arg19: memref<2x3xf32, #tpu.memory_space<vmem>>) attributes {dimension_semantics = [], scalar_prefetch = 0 : i64, scratch_operands = 0 : i64, tpu.core_type = #tpu.core_type<tc>} {
    %c0 = arith.constant 0 : index
    %c0_0 = arith.constant 0 : index
    %0 = vector.load %arg0[%c0, %c0_0] : memref<32x8xf32, #tpu.memory_space<vmem>>, vector<32x8xf32>
    %c0_1 = arith.constant 0 : index
    %c0_2 = arith.constant 0 : index
    %1 = vector.load %arg1[%c0_1, %c0_2] : memref<32x8xf32, #tpu.memory_space<vmem>>, vector<32x8xf32>
    %2 = vector.extract_strided_slice %0 {offsets = [0, 0], sizes = [30, 8], strides = [1, 1]} : vector<32x8xf32> to vector<30x8xf32>
    %3 = vector.extract_strided_slice %0 {offsets = [1, 0], sizes = [30, 8], strides = [1, 1]} : vector<32x8xf32> to vector<30x8xf32>
    %4 = vector.extract_strided_slice %0 {offsets = [2, 0], sizes = [30, 8], strides = [1, 1]} : vector<32x8xf32> to vector<30x8xf32>
    %5 = arith.addf %2, %3 : vector<30x8xf32>
    %6 = arith.addf %5, %4 : vector<30x8xf32>
    %7 = vector.extract_strided_slice %1 {offsets = [0, 0], sizes = [30, 8], strides = [1, 1]} : vector<32x8xf32> to vector<30x8xf32>
    %8 = arith.addf %2, %7 : vector<30x8xf32>
    %c0_3 = arith.constant 0 : index
    %c0_4 = arith.constant 0 : index
    %c0_5 = arith.constant 0 : index
    %9 = vector.load %arg2[%c0_3, %c0_4, %c0_5] : memref<3x8x32xf32, #tpu.memory_space<vmem>>, vector<1x8x32xf32>
    %10 = vector.shape_cast %9 : vector<1x8x32xf32> to vector<8x32xf32>
    %cst = arith.constant dense<0.000000e+00> : vector<30x32xf32>
    %11 = tpu.matmul %8, %10, %cst {dimension_numbers = #tpu.dot_dimension_numbers<[1], [0], [0], [1], [0, 0, 1, 1], [], []>} : vector<30x8xf32>, vector<8x32xf32>, vector<30x32xf32> -> vector<30x32xf32>
    %12 = vector.extract_strided_slice %1 {offsets = [1, 0], sizes = [30, 8], strides = [1, 1]} : vector<32x8xf32> to vector<30x8xf32>
    %13 = arith.addf %3, %12 : vector<30x8xf32>
    %c1 = arith.constant 1 : index
    %c0_6 = arith.constant 0 : index
    %c0_7 = arith.constant 0 : index
    %14 = vector.load %arg2[%c1, %c0_6, %c0_7] : memref<3x8x32xf32, #tpu.memory_space<vmem>>, vector<1x8x32xf32>
    %15 = vector.shape_cast %14 : vector<1x8x32xf32> to vector<8x32xf32>
    %cst_8 = arith.constant dense<0.000000e+00> : vector<30x32xf32>
    %16 = tpu.matmul %13, %15, %cst_8 {dimension_numbers = #tpu.dot_dimension_numbers<[1], [0], [0], [1], [0, 0, 1, 1], [], []>} : vector<30x8xf32>, vector<8x32xf32>, vector<30x32xf32> -> vector<30x32xf32>
    %17 = arith.addf %11, %16 : vector<30x32xf32>
    %18 = vector.extract_strided_slice %1 {offsets = [2, 0], sizes = [30, 8], strides = [1, 1]} : vector<32x8xf32> to vector<30x8xf32>
    %19 = arith.addf %4, %18 : vector<30x8xf32>
    %c2 = arith.constant 2 : index
    %c0_9 = arith.constant 0 : index
    %c0_10 = arith.constant 0 : index
    %20 = vector.load %arg2[%c2, %c0_9, %c0_10] : memref<3x8x32xf32, #tpu.memory_space<vmem>>, vector<1x8x32xf32>
    %21 = vector.shape_cast %20 : vector<1x8x32xf32> to vector<8x32xf32>
    %cst_11 = arith.constant dense<0.000000e+00> : vector<30x32xf32>
    %22 = tpu.matmul %19, %21, %cst_11 {dimension_numbers = #tpu.dot_dimension_numbers<[1], [0], [0], [1], [0, 0, 1, 1], [], []>} : vector<30x8xf32>, vector<8x32xf32>, vector<30x32xf32> -> vector<30x32xf32>
    %23 = arith.addf %17, %22 : vector<30x32xf32>
    %c0_12 = arith.constant 0 : index
    %c0_13 = arith.constant 0 : index
    %24 = vector.load %arg3[%c0_12, %c0_13] : memref<1x32xf32, #tpu.memory_space<vmem>>, vector<1x32xf32>
    %25 = vector.broadcast %24 : vector<1x32xf32> to vector<30x32xf32>
    %26 = arith.addf %23, %25 : vector<30x32xf32>
    %cst_14 = arith.constant 0.000000e+00 : f32
    %27 = vector.broadcast %cst_14 : f32 to vector<30x32xf32>
    %28 = arith.maximumf %26, %27 : vector<30x32xf32>
    %c0_15 = arith.constant 0 : index
    %c0_16 = arith.constant 0 : index
    %29 = vector.load %arg4[%c0_15, %c0_16] : memref<32x64xf32, #tpu.memory_space<vmem>>, vector<32x64xf32>
    %cst_17 = arith.constant dense<0.000000e+00> : vector<30x64xf32>
    %30 = tpu.matmul %28, %29, %cst_17 {dimension_numbers = #tpu.dot_dimension_numbers<[1], [0], [0], [1], [0, 0, 1, 1], [], []>} : vector<30x32xf32>, vector<32x64xf32>, vector<30x64xf32> -> vector<30x64xf32>
    %c0_18 = arith.constant 0 : index
    %c0_19 = arith.constant 0 : index
    %31 = vector.load %arg5[%c0_18, %c0_19] : memref<1x64xf32, #tpu.memory_space<vmem>>, vector<1x64xf32>
    %32 = vector.broadcast %31 : vector<1x64xf32> to vector<30x64xf32>
    %33 = arith.addf %30, %32 : vector<30x64xf32>
    %cst_20 = arith.constant 0.000000e+00 : f32
    %34 = vector.broadcast %cst_20 : f32 to vector<30x64xf32>
    %35 = arith.maximumf %33, %34 : vector<30x64xf32>
    %c0_21 = arith.constant 0 : index
    %c0_22 = arith.constant 0 : index
    %36 = vector.load %arg6[%c0_21, %c0_22] : memref<64x8xf32, #tpu.memory_space<vmem>>, vector<64x8xf32>
    %cst_23 = arith.constant dense<0.000000e+00> : vector<30x8xf32>
    %37 = tpu.matmul %35, %36, %cst_23 {dimension_numbers = #tpu.dot_dimension_numbers<[1], [0], [0], [1], [0, 0, 1, 1], [], []>} : vector<30x64xf32>, vector<64x8xf32>, vector<30x8xf32> -> vector<30x8xf32>
    %c0_24 = arith.constant 0 : index
    %c0_25 = arith.constant 0 : index
    %38 = vector.load %arg7[%c0_24, %c0_25] : memref<1x8xf32, #tpu.memory_space<vmem>>, vector<1x8xf32>
    %39 = vector.broadcast %38 : vector<1x8xf32> to vector<30x8xf32>
    %40 = arith.addf %37, %39 : vector<30x8xf32>
    %cst_26 = arith.constant dense<0.000000e+00> : vector<30xf32>
    %41 = vector.multi_reduction <add>, %40, %cst_26 [1] : vector<30x8xf32> to vector<30xf32>
    %42 = vector.shape_cast %41 : vector<30xf32> to vector<30x1xf32>
    %cst_27 = arith.constant 8.000000e+00 : f32
    %43 = vector.broadcast %cst_27 : f32 to vector<30x1xf32>
    %44 = arith.divf %42, %43 : vector<30x1xf32>
    %45 = vector.broadcast %44 : vector<30x1xf32> to vector<30x8xf32>
    %46 = arith.subf %40, %45 : vector<30x8xf32>
    %47 = arith.mulf %46, %46 : vector<30x8xf32>
    %cst_28 = arith.constant dense<0.000000e+00> : vector<30xf32>
    %48 = vector.multi_reduction <add>, %47, %cst_28 [1] : vector<30x8xf32> to vector<30xf32>
    %49 = vector.shape_cast %48 : vector<30xf32> to vector<30x1xf32>
    %cst_29 = arith.constant 8.000000e+00 : f32
    %50 = vector.broadcast %cst_29 : f32 to vector<30x1xf32>
    %51 = arith.divf %49, %50 : vector<30x1xf32>
    %52 = vector.broadcast %44 : vector<30x1xf32> to vector<30x8xf32>
    %53 = arith.subf %40, %52 : vector<30x8xf32>
    %cst_30 = arith.constant 9.99999974E-6 : f32
    %54 = vector.broadcast %cst_30 : f32 to vector<30x1xf32>
    %55 = arith.addf %51, %54 : vector<30x1xf32>
    %56 = math.rsqrt %55 : vector<30x1xf32>
    %57 = vector.broadcast %56 : vector<30x1xf32> to vector<30x8xf32>
    %58 = arith.mulf %53, %57 : vector<30x8xf32>
    %c0_31 = arith.constant 0 : index
    %c0_32 = arith.constant 0 : index
    %59 = vector.load %arg8[%c0_31, %c0_32] : memref<1x8xf32, #tpu.memory_space<vmem>>, vector<1x8xf32>
    %60 = vector.broadcast %59 : vector<1x8xf32> to vector<30x8xf32>
    %61 = arith.mulf %58, %60 : vector<30x8xf32>
    %c0_33 = arith.constant 0 : index
    %c0_34 = arith.constant 0 : index
    %62 = vector.load %arg9[%c0_33, %c0_34] : memref<1x8xf32, #tpu.memory_space<vmem>>, vector<1x8xf32>
    %63 = vector.broadcast %62 : vector<1x8xf32> to vector<30x8xf32>
    %64 = arith.addf %61, %63 : vector<30x8xf32>
    %c0_35 = arith.constant 0 : index
    %c0_36 = arith.constant 0 : index
    %65 = vector.load %arg10[%c0_35, %c0_36] : memref<8x64xf32, #tpu.memory_space<vmem>>, vector<8x64xf32>
    %cst_37 = arith.constant dense<0.000000e+00> : vector<30x64xf32>
    %66 = tpu.matmul %64, %65, %cst_37 {dimension_numbers = #tpu.dot_dimension_numbers<[1], [0], [0], [1], [0, 0, 1, 1], [], []>} : vector<30x8xf32>, vector<8x64xf32>, vector<30x64xf32> -> vector<30x64xf32>
    %c0_38 = arith.constant 0 : index
    %c0_39 = arith.constant 0 : index
    %67 = vector.load %arg11[%c0_38, %c0_39] : memref<8x64xf32, #tpu.memory_space<vmem>>, vector<8x64xf32>
    %cst_40 = arith.constant dense<0.000000e+00> : vector<30x64xf32>
    %68 = tpu.matmul %6, %67, %cst_40 {dimension_numbers = #tpu.dot_dimension_numbers<[1], [0], [0], [1], [0, 0, 1, 1], [], []>} : vector<30x8xf32>, vector<8x64xf32>, vector<30x64xf32> -> vector<30x64xf32>
    %c0_41 = arith.constant 0 : index
    %c0_42 = arith.constant 0 : index
    %69 = vector.load %arg12[%c0_41, %c0_42] : memref<2x30xf32, #tpu.memory_space<vmem>>, vector<2x30xf32>
    %70 = arith.mulf %66, %68 : vector<30x64xf32>
    %cst_43 = arith.constant dense<0.000000e+00> : vector<2x64xf32>
    %71 = tpu.matmul %69, %70, %cst_43 {dimension_numbers = #tpu.dot_dimension_numbers<[1], [0], [0], [1], [0, 0, 1, 1], [], []>} : vector<2x30xf32>, vector<30x64xf32>, vector<2x64xf32> -> vector<2x64xf32>
    %c0_44 = arith.constant 0 : index
    %c0_45 = arith.constant 0 : index
    %72 = vector.load %arg13[%c0_44, %c0_45] : memref<64x32xf32, #tpu.memory_space<vmem>>, vector<64x32xf32>
    %cst_46 = arith.constant dense<0.000000e+00> : vector<2x32xf32>
    %73 = tpu.matmul %71, %72, %cst_46 {dimension_numbers = #tpu.dot_dimension_numbers<[1], [0], [0], [1], [0, 0, 1, 1], [], []>} : vector<2x64xf32>, vector<64x32xf32>, vector<2x32xf32> -> vector<2x32xf32>
    %c0_47 = arith.constant 0 : index
    %c0_48 = arith.constant 0 : index
    %74 = vector.load %arg14[%c0_47, %c0_48] : memref<1x32xf32, #tpu.memory_space<vmem>>, vector<1x32xf32>
    %75 = vector.broadcast %74 : vector<1x32xf32> to vector<2x32xf32>
    %76 = arith.addf %73, %75 : vector<2x32xf32>
    %cst_49 = arith.constant 0.000000e+00 : f32
    %77 = vector.broadcast %cst_49 : f32 to vector<2x32xf32>
    %78 = arith.maximumf %76, %77 : vector<2x32xf32>
    %c0_50 = arith.constant 0 : index
    %c0_51 = arith.constant 0 : index
    %79 = vector.load %arg15[%c0_50, %c0_51] : memref<32x8xf32, #tpu.memory_space<vmem>>, vector<32x8xf32>
    %cst_52 = arith.constant dense<0.000000e+00> : vector<2x8xf32>
    %80 = tpu.matmul %78, %79, %cst_52 {dimension_numbers = #tpu.dot_dimension_numbers<[1], [0], [0], [1], [0, 0, 1, 1], [], []>} : vector<2x32xf32>, vector<32x8xf32>, vector<2x8xf32> -> vector<2x8xf32>
    %c0_53 = arith.constant 0 : index
    %c0_54 = arith.constant 0 : index
    %81 = vector.load %arg16[%c0_53, %c0_54] : memref<1x8xf32, #tpu.memory_space<vmem>>, vector<1x8xf32>
    %82 = vector.broadcast %81 : vector<1x8xf32> to vector<2x8xf32>
    %83 = arith.addf %80, %82 : vector<2x8xf32>
    %cst_55 = arith.constant 0.000000e+00 : f32
    %84 = vector.broadcast %cst_55 : f32 to vector<2x8xf32>
    %85 = arith.maximumf %83, %84 : vector<2x8xf32>
    %c0_56 = arith.constant 0 : index
    %c0_57 = arith.constant 0 : index
    %86 = vector.load %arg17[%c0_56, %c0_57] : memref<8x3xf32, #tpu.memory_space<vmem>>, vector<8x3xf32>
    %cst_58 = arith.constant dense<0.000000e+00> : vector<2x3xf32>
    %87 = tpu.matmul %85, %86, %cst_58 {dimension_numbers = #tpu.dot_dimension_numbers<[1], [0], [0], [1], [0, 0, 1, 1], [], []>} : vector<2x8xf32>, vector<8x3xf32>, vector<2x3xf32> -> vector<2x3xf32>
    %c0_59 = arith.constant 0 : index
    %c0_60 = arith.constant 0 : index
    %88 = vector.load %arg18[%c0_59, %c0_60] : memref<1x3xf32, #tpu.memory_space<vmem>>, vector<1x3xf32>
    %89 = vector.broadcast %88 : vector<1x3xf32> to vector<2x3xf32>
    %90 = arith.addf %87, %89 : vector<2x3xf32>
    %c0_61 = arith.constant 0 : index
    %c0_62 = arith.constant 0 : index
    %91 = vector.load %arg19[%c0_61, %c0_62] : memref<2x3xf32, #tpu.memory_space<vmem>>, vector<2x3xf32>
    tpu.vector_store %arg19[%c0_61, %c0_62], %90 {strides = array<i32>} : memref<2x3xf32, #tpu.memory_space<vmem>>, vector<2x3xf32>,
    return
  }
}

</mosaic_0001>

<llo_original>
// kernel: complor_forward.1
$region0: #{complor_forward.1}
  #allocation0 [shape = 'u32[]', space=smem, size = 0x4, offset = 0x4, fixed_abs, tag = 'smem constant byte address 0x4 - core index']
  #allocation1 [shape = 'u32[144,128]{1,0:T(1,128)}', space=vmem, size = 0x12000, scoped, tag = 'internal scratch']
  %s0 = inlined_call_operand.vmem [shape: f32[32,8], index: 0, kind: input, shape index: {}]
  %s1 = inlined_call_operand.vmem [shape: f32[32,8], index: 1, kind: input, shape index: {}]
  %s2 = inlined_call_operand.vmem [shape: f32[3,8,32], index: 2, kind: input, shape index: {}]
  %s3 = inlined_call_operand.vmem [shape: f32[1,32], index: 3, kind: input, shape index: {}]
  %s4 = inlined_call_operand.vmem [shape: f32[32,64], index: 4, kind: input, shape index: {}]
  %s5 = inlined_call_operand.vmem [shape: f32[1,64], index: 5, kind: input, shape index: {}]
  %s6 = inlined_call_operand.vmem [shape: f32[64,8], index: 6, kind: input, shape index: {}]
  %s7 = inlined_call_operand.vmem [shape: f32[1,8], index: 7, kind: input, shape index: {}]
  %s8 = inlined_call_operand.vmem [shape: f32[1,8], index: 8, kind: input, shape index: {}]
  %s9 = inlined_call_operand.vmem [shape: f32[1,8], index: 9, kind: input, shape index: {}]
  %s10 = inlined_call_operand.vmem [shape: f32[8,64], index: 10, kind: input, shape index: {}]
  %s11 = inlined_call_operand.vmem [shape: f32[8,64], index: 11, kind: input, shape index: {}]
  %s12 = inlined_call_operand.vmem [shape: f32[2,30], index: 12, kind: input, shape index: {}]
  %s13 = inlined_call_operand.vmem [shape: f32[64,32], index: 13, kind: input, shape index: {}]
  %s14 = inlined_call_operand.vmem [shape: f32[1,32], index: 14, kind: input, shape index: {}]
  %s15 = inlined_call_operand.vmem [shape: f32[32,8], index: 15, kind: input, shape index: {}]
  %s16 = inlined_call_operand.vmem [shape: f32[1,8], index: 16, kind: input, shape index: {}]
  %s17 = inlined_call_operand.vmem [shape: f32[8,3], index: 17, kind: input, shape index: {}]
  %s18 = inlined_call_operand.vmem [shape: f32[1,3], index: 18, kind: input, shape index: {}]
  %s19 = inlined_call_operand.hbm [shape: f32[2,3], index: 19, kind: output, shape index: {}]
  %s20 = sld [smem:[#allocation0]]
  $region86: #{complor_forward.1} parent=0
    _
  %s22 = ssub.s32 1, %s20
  %s23 = scalar_select 0, %s22, %s20
  $region1: #{complor_forward.1} parent=0
    #allocation2 [shape = 'u8[1024]{0}', space=vmem, size = 0x400, scoped, tag = 'output window, operand 0, single buffered']
    #allocation3 [shape = 's32[1]{0}', space=sflag, size = 0x4, scoped, tag = 'scoped memory for complor_forward.1']
    %24 = vsyncpa [#allocation3], 0
    // Predicated region
    $region2: #{complor_forward.1} parent=1 // pred_check
      _
    $region3: #{complor_forward.1} parent=1 // pred_check_branch
      %26 = sbr.rel (0) target = $region5
    $region4: #{complor_forward.1} parent=1 // pred_region
      _
    $region5: #{complor_forward.1} parent=1 // pred_fallthru
      _
    // Predicated region
    $region6: #{complor_forward.1} parent=1 // pred_check
      _
    $region7: #{complor_forward.1} parent=1 // pred_check_branch
      %28 = sbr.rel (0) target = $region9
    $region8: #{complor_forward.1} parent=1 // pred_region
      _
    $region9: #{complor_forward.1} parent=1 // pred_fallthru
      _
    // Predicated region
    $region10: #{complor_forward.1} parent=1 // pred_check
      _
    $region11: #{complor_forward.1} parent=1 // pred_check_branch
      %30 = sbr.rel (0) target = $region13
    $region12: #{complor_forward.1} parent=1 // pred_region
      _
    $region13: #{complor_forward.1} parent=1 // pred_fallthru
      _
    // Predicated region
    $region14: #{complor_forward.1} parent=1 // pred_check
      _
    $region15: #{complor_forward.1} parent=1 // pred_check_branch
      %32 = sbr.rel (0) target = $region17
    $region16: #{complor_forward.1} parent=1 // pred_region
      _
    $region17: #{complor_forward.1} parent=1 // pred_fallthru
      _
    // Predicated region
    $region18: #{complor_forward.1} parent=1 // pred_check
      _
    $region19: #{complor_forward.1} parent=1 // pred_check_branch
      %34 = sbr.rel (0) target = $region21
    $region20: #{complor_forward.1} parent=1 // pred_region
      _
    $region21: #{complor_forward.1} parent=1 // pred_fallthru
      _
    // Predicated region
    $region22: #{complor_forward.1} parent=1 // pred_check
      _
    $region23: #{complor_forward.1} parent=1 // pred_check_branch
      %36 = sbr.rel (0) target = $region25
    $region24: #{complor_forward.1} parent=1 // pred_region
      _
    $region25: #{complor_forward.1} parent=1 // pred_fallthru
      _
    // Predicated region
    $region26: #{complor_forward.1} parent=1 // pred_check
      _
    $region27: #{complor_forward.1} parent=1 // pred_check_branch
      %38 = sbr.rel (0) target = $region29
    $region28: #{complor_forward.1} parent=1 // pred_region
      _
    $region29: #{complor_forward.1} parent=1 // pred_fallthru
      _
    // Predicated region
    $region30: #{complor_forward.1} parent=1 // pred_check
      _
    $region31: #{complor_forward.1} parent=1 // pred_check_branch
      %40 = sbr.rel (0) target = $region33
    $region32: #{complor_forward.1} parent=1 // pred_region
      _
    $region33: #{complor_forward.1} parent=1 // pred_fallthru
      _
    // Predicated region
    $region34: #{complor_forward.1} parent=1 // pred_check
      _
    $region35: #{complor_forward.1} parent=1 // pred_check_branch
      %42 = sbr.rel (0) target = $region37
    $region36: #{complor_forward.1} parent=1 // pred_region
      _
    $region37: #{complor_forward.1} parent=1 // pred_fallthru
      _
    // Predicated region
    $region38: #{complor_forward.1} parent=1 // pred_check
      _
    $region39: #{complor_forward.1} parent=1 // pred_check_branch
      %44 = sbr.rel (0) target = $region41
    $region40: #{complor_forward.1} parent=1 // pred_region
      _
    $region41: #{complor_forward.1} parent=1 // pred_fallthru
      _
    // Predicated region
    $region42: #{complor_forward.1} parent=1 // pred_check
      _
    $region43: #{complor_forward.1} parent=1 // pred_check_branch
      %46 = sbr.rel (0) target = $region45
    $region44: #{complor_forward.1} parent=1 // pred_region
      _
    $region45: #{complor_forward.1} parent=1 // pred_fallthru
      _
    // Predicated region
    $region46: #{complor_forward.1} parent=1 // pred_check
      _
    $region47: #{complor_forward.1} parent=1 // pred_check_branch
      %48 = sbr.rel (0) target = $region49
    $region48: #{complor_forward.1} parent=1 // pred_region
      _
    $region49: #{complor_forward.1} parent=1 // pred_fallthru
      _
    // Predicated region
    $region50: #{complor_forward.1} parent=1 // pred_check
      _
    $region51: #{complor_forward.1} parent=1 // pred_check_branch
      %50 = sbr.rel (0) target = $region53
    $region52: #{complor_forward.1} parent=1 // pred_region
      _
    $region53: #{complor_forward.1} parent=1 // pred_fallthru
      _
    // Predicated region
    $region54: #{complor_forward.1} parent=1 // pred_check
      _
    $region55: #{complor_forward.1} parent=1 // pred_check_branch
      %52 = sbr.rel (0) target = $region57
    $region56: #{complor_forward.1} parent=1 // pred_region
      _
    $region57: #{complor_forward.1} parent=1 // pred_fallthru
      _
    // Predicated region
    $region58: #{complor_forward.1} parent=1 // pred_check
      _
    $region59: #{complor_forward.1} parent=1 // pred_check_branch
      %54 = sbr.rel (0) target = $region61
    $region60: #{complor_forward.1} parent=1 // pred_region
      _
    $region61: #{complor_forward.1} parent=1 // pred_fallthru
      _
    // Predicated region
    $region62: #{complor_forward.1} parent=1 // pred_check
      _
    $region63: #{complor_forward.1} parent=1 // pred_check_branch
      %56 = sbr.rel (0) target = $region65
    $region64: #{complor_forward.1} parent=1 // pred_region
      _
    $region65: #{complor_forward.1} parent=1 // pred_fallthru
      _
    // Predicated region
    $region66: #{complor_forward.1} parent=1 // pred_check
      _
    $region67: #{complor_forward.1} parent=1 // pred_check_branch
      %58 = sbr.rel (0) target = $region69
    $region68: #{complor_forward.1} parent=1 // pred_region
      _
    $region69: #{complor_forward.1} parent=1 // pred_fallthru
      _
    // Predicated region
    $region70: #{complor_forward.1} parent=1 // pred_check
      _
    $region71: #{complor_forward.1} parent=1 // pred_check_branch
      %60 = sbr.rel (0) target = $region73
    $region72: #{complor_forward.1} parent=1 // pred_region
      _
    $region73: #{complor_forward.1} parent=1 // pred_fallthru
      _
    // Predicated region
    $region74: #{complor_forward.1} parent=1 // pred_check
      _
    $region75: #{complor_forward.1} parent=1 // pred_check_branch
      %62 = sbr.rel (0) target = $region77
    $region76: #{complor_forward.1} parent=1 // pred_region
      _
    $region77: #{complor_forward.1} parent=1 // pred_fallthru
      _
    %v63 = vld [vmem:[%s0] sm:$0xff]
    %v64 = vld [vmem:[%s0 + $0x8] sm:$0xff]
    %v65 = vld [vmem:[%s0 + $0x10] sm:$0xff]
    %v66 = vld [vmem:[%s0 + $0x18] sm:$0xff]
    %v67 = vld [vmem:[%s1] sm:$0xff]
    %v68 = vld [vmem:[%s1 + $0x8] sm:$0xff]
    %v69 = vld [vmem:[%s1 + $0x10] sm:$0xff]
    %v70 = vld [vmem:[%s1 + $0x18] sm:$0xff]
    %vm75 = vcmask 1046528
    %v76 = vrot.slane %v63, 1
    %v77 = vrot.slane %v64, 1
    %v78 = vsel %vm75, %v76, %v77
    %v79 = vrot.slane %v65, 1
    %v80 = vsel %vm75, %v77, %v79
    %v81 = vrot.slane %v66, 1
    %v82 = vsel %vm75, %v79, %v81
    %v87 = vadd.f32 %v63, %v78
    %v88 = vadd.f32 %v64, %v80
    %v89 = vadd.f32 %v65, %v82
    %v90 = vadd.f32 %v66, %v81
    %vm91 = vcmask 1045504
    %v92 = vrot.slane %v63, 2
    %v93 = vrot.slane %v64, 2
    %v94 = vsel %vm91, %v92, %v93
    %v95 = vrot.slane %v65, 2
    %v96 = vsel %vm91, %v93, %v95
    %v97 = vrot.slane %v66, 2
    %v98 = vsel %vm91, %v95, %v97
    %v103 = vadd.f32 %v87, %v94
    %v104 = vadd.f32 %v88, %v96
    %v105 = vadd.f32 %v89, %v98
    %v106 = vadd.f32 %v90, %v97
    %v107 = vadd.f32 %v63, %v67
    %v108 = vadd.f32 %v64, %v68
    %v109 = vadd.f32 %v65, %v69
    %v110 = vadd.f32 %v66, %v70
    %v111 = vld [vmem:[%s2] sm:$0xff]
    %s112 = scalar_lea.vmem %s2, 8
    %v113 = vld [vmem:[%s112] sm:$0xff]
    %v118 = vrot.slane %v107, 1
    %v119 = vrot.slane %v108, 1
    %v120 = vsel %vm75, %v118, %v119
    %v121 = vrot.slane %v109, 1
    %v122 = vsel %vm75, %v119, %v121
    %v123 = vrot.slane %v110, 1
    %v124 = vsel %vm75, %v121, %v123
    %vm125 = vcmask 64512
    %v126 = vsel %vm125, %v120, 0
    %v128 = vsel %vm125, %v122, 0
    %v130 = vsel %vm125, %v124, 0
    %v132 = vsel %vm125, %v123, 0
    %134 = vmatprep.subr.mxu0 0.0
    %135 = vmatpush1.msra.mxu0 %v113
    %136 = vmatprep.subr.mxu0 0.0
    %137 = vmatpush1.msra.mxu0 0.0
    %138 = vmatprep.subr.mxu0 0.0
    %139 = vmatpush1.msra.mxu0 0.0
    %140 = vmatprep.subr.mxu0 0.0
    %141 = vmatpush1.msra.mxu0 0.0
    %142 = vmatprep.subr.mxu0 0.0
    %143 = vmatpush1.msra.mxu0 0.0
    %144 = vmatprep.subr.mxu0 0.0
    %145 = vmatpush1.msra.mxu0 0.0
    %146 = vmatprep.subr.mxu0 0.0
    %147 = vmatpush1.msra.mxu0 0.0
    %148 = vmatprep.subr.mxu0 0.0
    %149 = vmatpush1.msra.mxu0 0.0
    %150 = vmatprep.subr.mxu0 0.0
    %151 = vmatpush1.msra.mxu0 0.0
    %152 = vmatprep.subr.mxu0 0.0
    %153 = vmatpush1.msra.mxu0 0.0
    %154 = vmatprep.subr.mxu0 0.0
    %155 = vmatpush1.msra.mxu0 0.0
    %156 = vmatprep.subr.mxu0 0.0
    %157 = vmatpush1.msra.mxu0 0.0
    %158 = vmatprep.subr.mxu0 0.0
    %159 = vmatpush1.msra.mxu0 0.0
    %160 = vmatprep.subr.mxu0 0.0
    %161 = vmatpush1.msra.mxu0 0.0
    %162 = vmatprep.subr.mxu0 0.0
    %163 = vmatpush1.msra.mxu0 0.0
    %164 = vmatprep.subr.mxu0 0.0
    %165 = vmatpush1.msra.mxu0 0.0
    %166 = vmatprep.subr.mxu0 0.0
    %167 = vmatpush1.msra.mxu0 0.0
    %168 = vmatprep.subr.mxu0 0.0
    %169 = vmatpush1.msra.mxu0 0.0
    %170 = vmatprep.subr.mxu0 0.0
    %171 = vmatpush1.msra.mxu0 0.0
    %172 = vmatprep.subr.mxu0 0.0
    %173 = vmatpush1.msra.mxu0 0.0
    %174 = vmatprep.subr.mxu0 0.0
    %175 = vmatpush1.msra.mxu0 0.0
    %176 = vmatprep.subr.mxu0 0.0
    %177 = vmatpush1.msra.mxu0 0.0
    %178 = vmatprep.subr.mxu0 0.0
    %179 = vmatpush1.msra.mxu0 0.0
    %180 = vmatprep.subr.mxu0 0.0
    %181 = vmatpush1.msra.mxu0 0.0
    %182 = vmatprep.subr.mxu0 0.0
    %183 = vmatpush1.msra.mxu0 0.0
    %184 = vmatprep.subr.mxu0 0.0
    %185 = vmatpush1.msra.mxu0 0.0
    %186 = vmatprep.subr.mxu0 0.0
    %187 = vmatpush1.msra.mxu0 0.0
    %188 = vmatprep.subr.mxu0 0.0
    %189 = vmatpush1.msra.mxu0 0.0
    %190 = vmatprep.subr.mxu0 0.0
    %191 = vmatpush1.msra.mxu0 0.0
    %192 = vmatprep.subr.mxu0 0.0
    %193 = vmatpush1.msra.mxu0 0.0
    %194 = vmatprep.subr.mxu0 0.0
    %195 = vmatpush1.msra.mxu0 0.0
    %196 = vmatprep.subr.mxu0 0.0
    %197 = vmatpush1.msra.mxu0 0.0
    %198 = vmatprep.mubr.f32.mxu0 0.0
    %199 = vmatmul.mubr.f32.gmra.mrb[0].mxu0 %v126
    %v200 = vpop.f32.mrb[0].mxu0
    %v201 = vadd.f32 0.0, %v200
    %v202 = vpop.f32.mrb[0].mxu0
    %203 = vmatprep.mubr.f32.mxu0 0.0
    %204 = vmatmul.mubr.f32.gmra.mrb[0].mxu0 %v128
    %v205 = vpop.f32.mrb[0].mxu0
    %v206 = vadd.f32 0.0, %v205
    %v207 = vpop.f32.mrb[0].mxu0
    %208 = vmatprep.mubr.f32.mxu0 0.0
    %209 = vmatmul.mubr.f32.gmra.mrb[0].mxu0 %v130
    %v210 = vpop.f32.mrb[0].mxu0
    %v211 = vadd.f32 0.0, %v210
    %v212 = vpop.f32.mrb[0].mxu0
    %213 = vmatprep.mubr.f32.mxu0 0.0
    %214 = vmatmul.mubr.f32.gmra.mrb[0].mxu0 %v132
    %v215 = vpop.f32.mrb[0].mxu0
    %v216 = vadd.f32 0.0, %v215
    %v217 = vpop.f32.mrb[0].mxu0
    %218 = vdwg.mxu0
    %v219 = vsel %vm125, %v107, 0
    %v221 = vsel %vm125, %v108, 0
    %v223 = vsel %vm125, %v109, 0
    %v225 = vsel %vm125, %v110, 0
    %227 = vmatprep.subr.mxu0 0.0
    %228 = vmatpush1.msra.mxu0 %v111
    %229 = vmatprep.subr.mxu0 0.0
    %230 = vmatpush1.msra.mxu0 0.0
    %231 = vmatprep.subr.mxu0 0.0
    %232 = vmatpush1.msra.mxu0 0.0
    %233 = vmatprep.subr.mxu0 0.0
    %234 = vmatpush1.msra.mxu0 0.0
    %235 = vmatprep.subr.mxu0 0.0
    %236 = vmatpush1.msra.mxu0 0.0
    %237 = vmatprep.subr.mxu0 0.0
    %238 = vmatpush1.msra.mxu0 0.0
    %239 = vmatprep.subr.mxu0 0.0
    %240 = vmatpush1.msra.mxu0 0.0
    %241 = vmatprep.subr.mxu0 0.0
    %242 = vmatpush1.msra.mxu0 0.0
    %243 = vmatprep.subr.mxu0 0.0
    %244 = vmatpush1.msra.mxu0 0.0
    %245 = vmatprep.subr.mxu0 0.0
    %246 = vmatpush1.msra.mxu0 0.0
    %247 = vmatprep.subr.mxu0 0.0
    %248 = vmatpush1.msra.mxu0 0.0
    %249 = vmatprep.subr.mxu0 0.0
    %250 = vmatpush1.msra.mxu0 0.0
    %251 = vmatprep.subr.mxu0 0.0
    %252 = vmatpush1.msra.mxu0 0.0
    %253 = vmatprep.subr.mxu0 0.0
    %254 = vmatpush1.msra.mxu0 0.0
    %255 = vmatprep.subr.mxu0 0.0
    %256 = vmatpush1.msra.mxu0 0.0
    %257 = vmatprep.subr.mxu0 0.0
    %258 = vmatpush1.msra.mxu0 0.0
    %259 = vmatprep.subr.mxu0 0.0
    %260 = vmatpush1.msra.mxu0 0.0
    %261 = vmatprep.subr.mxu0 0.0
    %262 = vmatpush1.msra.mxu0 0.0
    %263 = vmatprep.subr.mxu0 0.0
    %264 = vmatpush1.msra.mxu0 0.0
    %265 = vmatprep.subr.mxu0 0.0
    %266 = vmatpush1.msra.mxu0 0.0
    %267 = vmatprep.subr.mxu0 0.0
    %268 = vmatpush1.msra.mxu0 0.0
    %269 = vmatprep.subr.mxu0 0.0
    %270 = vmatpush1.msra.mxu0 0.0
    %271 = vmatprep.subr.mxu0 0.0
    %272 = vmatpush1.msra.mxu0 0.0
    %273 = vmatprep.subr.mxu0 0.0
    %274 = vmatpush1.msra.mxu0 0.0
    %275 = vmatprep.subr.mxu0 0.0
    %276 = vmatpush1.msra.mxu0 0.0
    %277 = vmatprep.subr.mxu0 0.0
    %278 = vmatpush1.msra.mxu0 0.0
    %279 = vmatprep.subr.mxu0 0.0
    %280 = vmatpush1.msra.mxu0 0.0
    %281 = vmatprep.subr.mxu0 0.0
    %282 = vmatpush1.msra.mxu0 0.0
    %283 = vmatprep.subr.mxu0 0.0
    %284 = vmatpush1.msra.mxu0 0.0
    %285 = vmatprep.subr.mxu0 0.0
    %286 = vmatpush1.msra.mxu0 0.0
    %287 = vmatprep.subr.mxu0 0.0
    %288 = vmatpush1.msra.mxu0 0.0
    %289 = vmatprep.subr.mxu0 0.0
    %290 = vmatpush1.msra.mxu0 0.0
    %291 = vmatprep.mubr.f32.mxu0 0.0
    %292 = vmatmul.mubr.f32.gmra.mrb[0].mxu0 %v219
    %v293 = vpop.f32.mrb[0].mxu0
    %v294 = vadd.f32 %v201, %v293
    %v295 = vpop.f32.mrb[0].mxu0
    %296 = vmatprep.mubr.f32.mxu0 0.0
    %297 = vmatmul.mubr.f32.gmra.mrb[0].mxu0 %v221
    %v298 = vpop.f32.mrb[0].mxu0
    %v299 = vadd.f32 %v206, %v298
    %v300 = vpop.f32.mrb[0].mxu0
    %301 = vmatprep.mubr.f32.mxu0 0.0
    %302 = vmatmul.mubr.f32.gmra.mrb[0].mxu0 %v223
    %v303 = vpop.f32.mrb[0].mxu0
    %v304 = vadd.f32 %v211, %v303
    %v305 = vpop.f32.mrb[0].mxu0
    %306 = vmatprep.mubr.f32.mxu0 0.0
    %307 = vmatmul.mubr.f32.gmra.mrb[0].mxu0 %v225
    %v308 = vpop.f32.mrb[0].mxu0
    %v309 = vadd.f32 %v216, %v308
    %v310 = vpop.f32.mrb[0].mxu0
    %311 = vdwg.mxu0
    %s312 = scalar_lea.vmem %s2, 16
    %v313 = vld [vmem:[%s312] sm:$0xff]
    %v314 = vrot.slane %v107, 2
    %v315 = vrot.slane %v108, 2
    %v316 = vsel %vm91, %v314, %v315
    %v317 = vrot.slane %v109, 2
    %v318 = vsel %vm91, %v315, %v317
    %v319 = vrot.slane %v110, 2
    %v320 = vsel %vm91, %v317, %v319
    %v321 = vsel %vm125, %v316, 0
    %v323 = vsel %vm125, %v318, 0
    %v325 = vsel %vm125, %v320, 0
    %v327 = vsel %vm125, %v319, 0
    %329 = vmatprep.subr.mxu0 0.0
    %330 = vmatpush1.msra.mxu0 %v313
    %331 = vmatprep.subr.mxu0 0.0
    %332 = vmatpush1.msra.mxu0 0.0
    %333 = vmatprep.subr.mxu0 0.0
    %334 = vmatpush1.msra.mxu0 0.0
    %335 = vmatprep.subr.mxu0 0.0
    %336 = vmatpush1.msra.mxu0 0.0
    %337 = vmatprep.subr.mxu0 0.0
    %338 = vmatpush1.msra.mxu0 0.0
    %339 = vmatprep.subr.mxu0 0.0
    %340 = vmatpush1.msra.mxu0 0.0
    %341 = vmatprep.subr.mxu0 0.0
    %342 = vmatpush1.msra.mxu0 0.0
    %343 = vmatprep.subr.mxu0 0.0
    %344 = vmatpush1.msra.mxu0 0.0
    %345 = vmatprep.subr.mxu0 0.0
    %346 = vmatpush1.msra.mxu0 0.0
    %347 = vmatprep.subr.mxu0 0.0
    %348 = vmatpush1.msra.mxu0 0.0
    %349 = vmatprep.subr.mxu0 0.0
    %350 = vmatpush1.msra.mxu0 0.0
    %351 = vmatprep.subr.mxu0 0.0
    %352 = vmatpush1.msra.mxu0 0.0
    %353 = vmatprep.subr.mxu0 0.0
    %354 = vmatpush1.msra.mxu0 0.0
    %355 = vmatprep.subr.mxu0 0.0
    %356 = vmatpush1.msra.mxu0 0.0
    %357 = vmatprep.subr.mxu0 0.0
    %358 = vmatpush1.msra.mxu0 0.0
    %359 = vmatprep.subr.mxu0 0.0
    %360 = vmatpush1.msra.mxu0 0.0
    %361 = vmatprep.subr.mxu0 0.0
    %362 = vmatpush1.msra.mxu0 0.0
    %363 = vmatprep.subr.mxu0 0.0
    %364 = vmatpush1.msra.mxu0 0.0
    %365 = vmatprep.subr.mxu0 0.0
    %366 = vmatpush1.msra.mxu0 0.0
    %367 = vmatprep.subr.mxu0 0.0
    %368 = vmatpush1.msra.mxu0 0.0
    %369 = vmatprep.subr.mxu0 0.0
    %370 = vmatpush1.msra.mxu0 0.0
    %371 = vmatprep.subr.mxu0 0.0
    %372 = vmatpush1.msra.mxu0 0.0
    %373 = vmatprep.subr.mxu0 0.0
    %374 = vmatpush1.msra.mxu0 0.0
    %375 = vmatprep.subr.mxu0 0.0
    %376 = vmatpush1.msra.mxu0 0.0
    %377 = vmatprep.subr.mxu0 0.0
    %378 = vmatpush1.msra.mxu0 0.0
    %379 = vmatprep.subr.mxu0 0.0
    %380 = vmatpush1.msra.mxu0 0.0
    %381 = vmatprep.subr.mxu0 0.0
    %382 = vmatpush1.msra.mxu0 0.0
    %383 = vmatprep.subr.mxu0 0.0
    %384 = vmatpush1.msra.mxu0 0.0
    %385 = vmatprep.subr.mxu0 0.0
    %386 = vmatpush1.msra.mxu0 0.0
    %387 = vmatprep.subr.mxu0 0.0
    %388 = vmatpush1.msra.mxu0 0.0
    %389 = vmatprep.subr.mxu0 0.0
    %390 = vmatpush1.msra.mxu0 0.0
    %391 = vmatprep.subr.mxu0 0.0
    %392 = vmatpush1.msra.mxu0 0.0
    %393 = vmatprep.mubr.f32.mxu0 0.0
    %394 = vmatmul.mubr.f32.gmra.mrb[0].mxu0 %v321
    %v395 = vpop.f32.mrb[0].mxu0
    %v396 = vadd.f32 0.0, %v395
    %v397 = vpop.f32.mrb[0].mxu0
    %398 = vmatprep.mubr.f32.mxu0 0.0
    %399 = vmatmul.mubr.f32.gmra.mrb[0].mxu0 %v323
    %v400 = vpop.f32.mrb[0].mxu0
    %v401 = vadd.f32 0.0, %v400
    %v402 = vpop.f32.mrb[0].mxu0
    %403 = vmatprep.mubr.f32.mxu0 0.0
    %404 = vmatmul.mubr.f32.gmra.mrb[0].mxu0 %v325
    %v405 = vpop.f32.mrb[0].mxu0
    %v406 = vadd.f32 0.0, %v405
    %v407 = vpop.f32.mrb[0].mxu0
    %408 = vmatprep.mubr.f32.mxu0 0.0
    %409 = vmatmul.mubr.f32.gmra.mrb[0].mxu0 %v327
    %v410 = vpop.f32.mrb[0].mxu0
    %v411 = vadd.f32 0.0, %v410
    %v412 = vpop.f32.mrb[0].mxu0
    %413 = vdwg.mxu0
    %v414 = vadd.f32 %v294, %v396
    %v415 = vadd.f32 %v299, %v401
    %v416 = vadd.f32 %v304, %v406
    %v417 = vadd.f32 %v309, %v411
    %v418 = vld [vmem:[%s3] sm:$0x1]
    %v420 = vlaneseq
    %v421 = vshrl.u32 %v420, 7
    %v422 = vsub.s32 0, %v421
    %v423 = vrot.slane %v418, %v422
    %v425 = vadd.f32 %v414, %v423
    %v426 = vadd.f32 %v415, %v423
    %v427 = vadd.f32 %v416, %v423
    %v428 = vadd.f32 %v417, %v423
    %v429 = vmax.f32 %v425, 0.0
    %v430 = vmax.f32 %v426, 0.0
    %v431 = vmax.f32 %v427, 0.0
    %v432 = vmax.f32 %v428, 0.0
    %v433 = vld [vmem:[%s4] sm:$0xff]
    %v434 = vld [vmem:[%s4 + $0x8] sm:$0xff]
    %v435 = vld [vmem:[%s4 + $0x10] sm:$0xff]
    %v436 = vld [vmem:[%s4 + $0x18] sm:$0xff]
    %v437 = vld [vmem:[%s5] sm:$0x1]
    %v439 = vlaneseq
    %v440 = vshrl.u32 %v439, 7
    %v441 = vsub.s32 0, %v440
    %v442 = vrot.slane %v437, %v441
    %vm444 = vcmask 261120
    %v446 = vsel %vm444, %v429, 0
    %v449 = vsel %vm444, %v430, 0
    %v452 = vsel %vm444, %v431, 0
    %v455 = vsel %vm444, %v432, 0
    %457 = vmatprep.subr.mxu0 0.0
    %458 = vmatpush1.msra.mxu0 %v433
    %459 = vmatprep.subr.mxu0 0.0
    %460 = vmatpush1.msra.mxu0 %v434
    %461 = vmatprep.subr.mxu0 0.0
    %462 = vmatpush1.msra.mxu0 %v435
    %463 = vmatprep.subr.mxu0 0.0
    %464 = vmatpush1.msra.mxu0 %v436
    %465 = vmatprep.subr.mxu0 0.0
    %466 = vmatpush1.msra.mxu0 0.0
    %467 = vmatprep.subr.mxu0 0.0
    %468 = vmatpush1.msra.mxu0 0.0
    %469 = vmatprep.subr.mxu0 0.0
    %470 = vmatpush1.msra.mxu0 0.0
    %471 = vmatprep.subr.mxu0 0.0
    %472 = vmatpush1.msra.mxu0 0.0
    %473 = vmatprep.subr.mxu0 0.0
    %474 = vmatpush1.msra.mxu0 0.0
    %475 = vmatprep.subr.mxu0 0.0
    %476 = vmatpush1.msra.mxu0 0.0
    %477 = vmatprep.subr.mxu0 0.0
    %478 = vmatpush1.msra.mxu0 0.0
    %479 = vmatprep.subr.mxu0 0.0
    %480 = vmatpush1.msra.mxu0 0.0
    %481 = vmatprep.subr.mxu0 0.0
    %482 = vmatpush1.msra.mxu0 0.0
    %483 = vmatprep.subr.mxu0 0.0
    %484 = vmatpush1.msra.mxu0 0.0
    %485 = vmatprep.subr.mxu0 0.0
    %486 = vmatpush1.msra.mxu0 0.0
    %487 = vmatprep.subr.mxu0 0.0
    %488 = vmatpush1.msra.mxu0 0.0
    %489 = vmatprep.subr.mxu0 0.0
    %490 = vmatpush1.msra.mxu0 0.0
    %491 = vmatprep.subr.mxu0 0.0
    %492 = vmatpush1.msra.mxu0 0.0
    %493 = vmatprep.subr.mxu0 0.0
    %494 = vmatpush1.msra.mxu0 0.0
    %495 = vmatprep.subr.mxu0 0.0
    %496 = vmatpush1.msra.mxu0 0.0
    %497 = vmatprep.subr.mxu0 0.0
    %498 = vmatpush1.msra.mxu0 0.0
    %499 = vmatprep.subr.mxu0 0.0
    %500 = vmatpush1.msra.mxu0 0.0
    %501 = vmatprep.subr.mxu0 0.0
    %502 = vmatpush1.msra.mxu0 0.0
    %503 = vmatprep.subr.mxu0 0.0
    %504 = vmatpush1.msra.mxu0 0.0
    %505 = vmatprep.subr.mxu0 0.0
    %506 = vmatpush1.msra.mxu0 0.0
    %507 = vmatprep.subr.mxu0 0.0
    %508 = vmatpush1.msra.mxu0 0.0
    %509 = vmatprep.subr.mxu0 0.0
    %510 = vmatpush1.msra.mxu0 0.0
    %511 = vmatprep.subr.mxu0 0.0
    %512 = vmatpush1.msra.mxu0 0.0
    %513 = vmatprep.subr.mxu0 0.0
    %514 = vmatpush1.msra.mxu0 0.0
    %515 = vmatprep.subr.mxu0 0.0
    %516 = vmatpush1.msra.mxu0 0.0
    %517 = vmatprep.subr.mxu0 0.0
    %518 = vmatpush1.msra.mxu0 0.0
    %519 = vmatprep.subr.mxu0 0.0
    %520 = vmatpush1.msra.mxu0 0.0
    %521 = vmatprep.mubr.f32.mxu0 0.0
    %522 = vmatmul.mubr.f32.gmra.mrb[0].mxu0 %v446
    %v523 = vpop.f32.mrb[0].mxu0
    %v524 = vadd.f32 %v442, %v523
    %v525 = vpop.f32.mrb[0].mxu0
    %526 = vmatprep.mubr.f32.mxu0 0.0
    %527 = vmatmul.mubr.f32.gmra.mrb[0].mxu0 %v449
    %v528 = vpop.f32.mrb[0].mxu0
    %v529 = vadd.f32 %v442, %v528
    %v530 = vpop.f32.mrb[0].mxu0
    %531 = vmatprep.mubr.f32.mxu0 0.0
    %532 = vmatmul.mubr.f32.gmra.mrb[0].mxu0 %v452
    %v533 = vpop.f32.mrb[0].mxu0
    %v534 = vadd.f32 %v442, %v533
    %v535 = vpop.f32.mrb[0].mxu0
    %536 = vmatprep.mubr.f32.mxu0 0.0
    %537 = vmatmul.mubr.f32.gmra.mrb[0].mxu0 %v455
    %v538 = vpop.f32.mrb[0].mxu0
    %v539 = vadd.f32 %v442, %v538
    %v540 = vpop.f32.mrb[0].mxu0
    %541 = vdwg.mxu0
    %v542 = vmax.f32 %v524, 0.0
    %v543 = vmax.f32 %v529, 0.0
    %v544 = vmax.f32 %v534, 0.0
    %v545 = vmax.f32 %v539, 0.0
    %v546 = vld [vmem:[%s6] sm:$0xff]
    %v547 = vld [vmem:[%s6 + $0x8] sm:$0xff]
    %v548 = vld [vmem:[%s6 + $0x10] sm:$0xff]
    %v549 = vld [vmem:[%s6 + $0x18] sm:$0xff]
    %v550 = vld [vmem:[%s6 + $0x20] sm:$0xff]
    %v551 = vld [vmem:[%s6 + $0x28] sm:$0xff]
    %v552 = vld [vmem:[%s6 + $0x30] sm:$0xff]
    %v553 = vld [vmem:[%s6 + $0x38] sm:$0xff]
    %v554 = vld [vmem:[%s7] sm:$0x1]
    %v556 = vlaneseq
    %v557 = vshrl.u32 %v556, 7
    %v558 = vsub.s32 0, %v557
    %v559 = vrot.slane %v554, %v558
    %vm561 = vcmask 523264
    %v563 = vsel %vm561, %v542, 0
    %v566 = vsel %vm561, %v543, 0
    %v569 = vsel %vm561, %v544, 0
    %v572 = vsel %vm561, %v545, 0
    %574 = vmatprep.subr.mxu0 0.0
    %575 = vmatpush1.msra.mxu0 %v546
    %576 = vmatprep.subr.mxu0 0.0
    %577 = vmatpush1.msra.mxu0 %v547
    %578 = vmatprep.subr.mxu0 0.0
    %579 = vmatpush1.msra.mxu0 %v548
    %580 = vmatprep.subr.mxu0 0.0
    %581 = vmatpush1.msra.mxu0 %v549
    %582 = vmatprep.subr.mxu0 0.0
    %583 = vmatpush1.msra.mxu0 %v550
    %584 = vmatprep.subr.mxu0 0.0
    %585 = vmatpush1.msra.mxu0 %v551
    %586 = vmatprep.subr.mxu0 0.0
    %587 = vmatpush1.msra.mxu0 %v552
    %588 = vmatprep.subr.mxu0 0.0
    %589 = vmatpush1.msra.mxu0 %v553
    %590 = vmatprep.subr.mxu0 0.0
    %591 = vmatpush1.msra.mxu0 0.0
    %592 = vmatprep.subr.mxu0 0.0
    %593 = vmatpush1.msra.mxu0 0.0
    %594 = vmatprep.subr.mxu0 0.0
    %595 = vmatpush1.msra.mxu0 0.0
    %596 = vmatprep.subr.mxu0 0.0
    %597 = vmatpush1.msra.mxu0 0.0
    %598 = vmatprep.subr.mxu0 0.0
    %599 = vmatpush1.msra.mxu0 0.0
    %600 = vmatprep.subr.mxu0 0.0
    %601 = vmatpush1.msra.mxu0 0.0
    %602 = vmatprep.subr.mxu0 0.0
    %603 = vmatpush1.msra.mxu0 0.0
    %604 = vmatprep.subr.mxu0 0.0
    %605 = vmatpush1.msra.mxu0 0.0
    %606 = vmatprep.subr.mxu0 0.0
    %607 = vmatpush1.msra.mxu0 0.0
    %608 = vmatprep.subr.mxu0 0.0
    %609 = vmatpush1.msra.mxu0 0.0
    %610 = vmatprep.subr.mxu0 0.0
    %611 = vmatpush1.msra.mxu0 0.0
    %612 = vmatprep.subr.mxu0 0.0
    %613 = vmatpush1.msra.mxu0 0.0
    %614 = vmatprep.subr.mxu0 0.0
    %615 = vmatpush1.msra.mxu0 0.0
    %616 = vmatprep.subr.mxu0 0.0
    %617 = vmatpush1.msra.mxu0 0.0
    %618 = vmatprep.subr.mxu0 0.0
    %619 = vmatpush1.msra.mxu0 0.0
    %620 = vmatprep.subr.mxu0 0.0
    %621 = vmatpush1.msra.mxu0 0.0
    %622 = vmatprep.subr.mxu0 0.0
    %623 = vmatpush1.msra.mxu0 0.0
    %624 = vmatprep.subr.mxu0 0.0
    %625 = vmatpush1.msra.mxu0 0.0
    %626 = vmatprep.subr.mxu0 0.0
    %627 = vmatpush1.msra.mxu0 0.0
    %628 = vmatprep.subr.mxu0 0.0
    %629 = vmatpush1.msra.mxu0 0.0
    %630 = vmatprep.subr.mxu0 0.0
    %631 = vmatpush1.msra.mxu0 0.0
    %632 = vmatprep.subr.mxu0 0.0
    %633 = vmatpush1.msra.mxu0 0.0
    %634 = vmatprep.subr.mxu0 0.0
    %635 = vmatpush1.msra.mxu0 0.0
    %636 = vmatprep.subr.mxu0 0.0
    %637 = vmatpush1.msra.mxu0 0.0
    %638 = vmatprep.mubr.f32.mxu0 0.0
    %639 = vmatmul.mubr.f32.gmra.mrb[0].mxu0 %v563
    %v640 = vpop.f32.mrb[0].mxu0
    %v641 = vadd.f32 %v559, %v640
    %v642 = vpop.f32.mrb[0].mxu0
    %643 = vmatprep.mubr.f32.mxu0 0.0
    %644 = vmatmul.mubr.f32.gmra.mrb[0].mxu0 %v566
    %v645 = vpop.f32.mrb[0].mxu0
    %v646 = vadd.f32 %v559, %v645
    %v647 = vpop.f32.mrb[0].mxu0
    %648 = vmatprep.mubr.f32.mxu0 0.0
    %649 = vmatmul.mubr.f32.gmra.mrb[0].mxu0 %v569
    %v650 = vpop.f32.mrb[0].mxu0
    %v651 = vadd.f32 %v559, %v650
    %v652 = vpop.f32.mrb[0].mxu0
    %653 = vmatprep.mubr.f32.mxu0 0.0
    %654 = vmatmul.mubr.f32.gmra.mrb[0].mxu0 %v572
    %v655 = vpop.f32.mrb[0].mxu0
    %v656 = vadd.f32 %v559, %v655
    %v657 = vpop.f32.mrb[0].mxu0
    %658 = vdwg.mxu0
    %v659 = vsel %vm125, %v641, 0.0
    %660 = vadd.xlane.f32.xlu0 %v659
    %v661 = vpop.xlane.xlu0 %660
    %v662 = vsel %vm125, %v646, 0.0
    %663 = vadd.xlane.f32.xlu0 %v662
    %v664 = vpop.xlane.xlu0 %663
    %v665 = vsel %vm125, %v651, 0.0
    %666 = vadd.xlane.f32.xlu0 %v665
    %v667 = vpop.xlane.xlu0 %666
    %vm668 = vcmask 62464
    %v669 = vsel %vm668, %v656, 0.0
    %670 = vadd.xlane.f32.xlu0 %v669
    %v671 = vpop.xlane.xlu0 %670
    %v672 = vrcp.pop 8.0
    %v673 = vmul.f32 %v661, %v672
    %v674 = vmul.f32 %v664, %v672
    %v675 = vmul.f32 %v667, %v672
    %v676 = vmul.f32 %v671, %v672
    %v677 = vsub.f32 %v641, %v673
    %v678 = vsub.f32 %v646, %v674
    %v679 = vsub.f32 %v651, %v675
    %v680 = vsub.f32 %v656, %v676
    %v681 = vmul.f32 %v677, %v677
    %v682 = vmul.f32 %v678, %v678
    %v683 = vmul.f32 %v679, %v679
    %v684 = vmul.f32 %v680, %v680
    %v685 = vsel %vm125, %v681, 0.0
    %686 = vadd.xlane.f32.xlu0 %v685
    %v687 = vpop.xlane.xlu0 %686
    %v688 = vsel %vm125, %v682, 0.0
    %689 = vadd.xlane.f32.xlu0 %v688
    %v690 = vpop.xlane.xlu0 %689
    %v691 = vsel %vm125, %v683, 0.0
    %692 = vadd.xlane.f32.xlu0 %v691
    %v693 = vpop.xlane.xlu0 %692
    %v694 = vsel %vm668, %v684, 0.0
    %695 = vadd.xlane.f32.xlu0 %v694
    %v696 = vpop.xlane.xlu0 %695
    %v697 = vmul.f32 %v687, %v672
    %v698 = vmul.f32 %v690, %v672
    %v699 = vmul.f32 %v693, %v672
    %v700 = vmul.f32 %v696, %v672
    %v701 = vadd.f32 %v697, 1e-05
    %v702 = vadd.f32 %v698, 1e-05
    %v703 = vadd.f32 %v699, 1e-05
    %v704 = vadd.f32 %v700, 1e-05
    %v705 = vrsqrt.pop %v701
    %v706 = vrsqrt.pop %v702
    %v707 = vrsqrt.pop %v703
    %v708 = vrsqrt.pop %v704
    %v709 = vmul.f32 %v677, %v705
    %v710 = vmul.f32 %v678, %v706
    %v711 = vmul.f32 %v679, %v707
    %v712 = vmul.f32 %v680, %v708
    %v713 = vld [vmem:[%s8] sm:$0x1]
    %v715 = vlaneseq
    %v716 = vshrl.u32 %v715, 7
    %v717 = vsub.s32 0, %v716
    %v718 = vrot.slane %v713, %v717
    %v720 = vmul.f32 %v709, %v718
    %v721 = vmul.f32 %v710, %v718
    %v722 = vmul.f32 %v711, %v718
    %v723 = vmul.f32 %v712, %v718
    %v724 = vld [vmem:[%s9] sm:$0x1]
    %v726 = vlaneseq
    %v727 = vshrl.u32 %v726, 7
    %v728 = vsub.s32 0, %v727
    %v729 = vrot.slane %v724, %v728
    %v731 = vadd.f32 %v720, %v729
    %v732 = vadd.f32 %v721, %v729
    %v733 = vadd.f32 %v722, %v729
    %v734 = vadd.f32 %v723, %v729
    %v735 = vld [vmem:[%s10] sm:$0xff]
    %v737 = vsel %vm125, %v731, 0
    %v740 = vsel %vm125, %v732, 0
    %v743 = vsel %vm125, %v733, 0
    %v746 = vsel %vm125, %v734, 0
    %748 = vmatprep.subr.mxu0 0.0
    %749 = vmatpush1.msra.mxu0 %v735
    %750 = vmatprep.subr.mxu0 0.0
    %751 = vmatpush1.msra.mxu0 0.0
    %752 = vmatprep.subr.mxu0 0.0
    %753 = vmatpush1.msra.mxu0 0.0
    %754 = vmatprep.subr.mxu0 0.0
    %755 = vmatpush1.msra.mxu0 0.0
    %756 = vmatprep.subr.mxu0 0.0
    %757 = vmatpush1.msra.mxu0 0.0
    %758 = vmatprep.subr.mxu0 0.0
    %759 = vmatpush1.msra.mxu0 0.0
    %760 = vmatprep.subr.mxu0 0.0
    %761 = vmatpush1.msra.mxu0 0.0
    %762 = vmatprep.subr.mxu0 0.0
    %763 = vmatpush1.msra.mxu0 0.0
    %764 = vmatprep.subr.mxu0 0.0
    %765 = vmatpush1.msra.mxu0 0.0
    %766 = vmatprep.subr.mxu0 0.0
    %767 = vmatpush1.msra.mxu0 0.0
    %768 = vmatprep.subr.mxu0 0.0
    %769 = vmatpush1.msra.mxu0 0.0
    %770 = vmatprep.subr.mxu0 0.0
    %771 = vmatpush1.msra.mxu0 0.0
    %772 = vmatprep.subr.mxu0 0.0
    %773 = vmatpush1.msra.mxu0 0.0
    %774 = vmatprep.subr.mxu0 0.0
    %775 = vmatpush1.msra.mxu0 0.0
    %776 = vmatprep.subr.mxu0 0.0
    %777 = vmatpush1.msra.mxu0 0.0
    %778 = vmatprep.subr.mxu0 0.0
    %779 = vmatpush1.msra.mxu0 0.0
    %780 = vmatprep.subr.mxu0 0.0
    %781 = vmatpush1.msra.mxu0 0.0
    %782 = vmatprep.subr.mxu0 0.0
    %783 = vmatpush1.msra.mxu0 0.0
    %784 = vmatprep.subr.mxu0 0.0
    %785 = vmatpush1.msra.mxu0 0.0
    %786 = vmatprep.subr.mxu0 0.0
    %787 = vmatpush1.msra.mxu0 0.0
    %788 = vmatprep.subr.mxu0 0.0
    %789 = vmatpush1.msra.mxu0 0.0
    %790 = vmatprep.subr.mxu0 0.0
    %791 = vmatpush1.msra.mxu0 0.0
    %792 = vmatprep.subr.mxu0 0.0
    %793 = vmatpush1.msra.mxu0 0.0
    %794 = vmatprep.subr.mxu0 0.0
    %795 = vmatpush1.msra.mxu0 0.0
    %796 = vmatprep.subr.mxu0 0.0
    %797 = vmatpush1.msra.mxu0 0.0
    %798 = vmatprep.subr.mxu0 0.0
    %799 = vmatpush1.msra.mxu0 0.0
    %800 = vmatprep.subr.mxu0 0.0
    %801 = vmatpush1.msra.mxu0 0.0
    %802 = vmatprep.subr.mxu0 0.0
    %803 = vmatpush1.msra.mxu0 0.0
    %804 = vmatprep.subr.mxu0 0.0
    %805 = vmatpush1.msra.mxu0 0.0
    %806 = vmatprep.subr.mxu0 0.0
    %807 = vmatpush1.msra.mxu0 0.0
    %808 = vmatprep.subr.mxu0 0.0
    %809 = vmatpush1.msra.mxu0 0.0
    %810 = vmatprep.subr.mxu0 0.0
    %811 = vmatpush1.msra.mxu0 0.0
    %812 = vmatprep.mubr.f32.mxu0 0.0
    %813 = vmatmul.mubr.f32.gmra.mrb[0].mxu0 %v737
    %v814 = vpop.f32.mrb[0].mxu0
    %v815 = vadd.f32 0.0, %v814
    %v816 = vpop.f32.mrb[0].mxu0
    %817 = vmatprep.mubr.f32.mxu0 0.0
    %818 = vmatmul.mubr.f32.gmra.mrb[0].mxu0 %v740
    %v819 = vpop.f32.mrb[0].mxu0
    %v820 = vadd.f32 0.0, %v819
    %v821 = vpop.f32.mrb[0].mxu0
    %822 = vmatprep.mubr.f32.mxu0 0.0
    %823 = vmatmul.mubr.f32.gmra.mrb[0].mxu0 %v743
    %v824 = vpop.f32.mrb[0].mxu0
    %v825 = vadd.f32 0.0, %v824
    %v826 = vpop.f32.mrb[0].mxu0
    %827 = vmatprep.mubr.f32.mxu0 0.0
    %828 = vmatmul.mubr.f32.gmra.mrb[0].mxu0 %v746
    %v829 = vpop.f32.mrb[0].mxu0
    %v830 = vadd.f32 0.0, %v829
    %v831 = vpop.f32.mrb[0].mxu0
    %832 = vdwg.mxu0
    %v833 = vld [vmem:[%s11] sm:$0xff]
    %v835 = vsel %vm125, %v103, 0
    %v838 = vsel %vm125, %v104, 0
    %v841 = vsel %vm125, %v105, 0
    %v844 = vsel %vm125, %v106, 0
    %846 = vmatprep.subr.mxu0 0.0
    %847 = vmatpush1.msra.mxu0 %v833
    %848 = vmatprep.subr.mxu0 0.0
    %849 = vmatpush1.msra.mxu0 0.0
    %850 = vmatprep.subr.mxu0 0.0
    %851 = vmatpush1.msra.mxu0 0.0
    %852 = vmatprep.subr.mxu0 0.0
    %853 = vmatpush1.msra.mxu0 0.0
    %854 = vmatprep.subr.mxu0 0.0
    %855 = vmatpush1.msra.mxu0 0.0
    %856 = vmatprep.subr.mxu0 0.0
    %857 = vmatpush1.msra.mxu0 0.0
    %858 = vmatprep.subr.mxu0 0.0
    %859 = vmatpush1.msra.mxu0 0.0
    %860 = vmatprep.subr.mxu0 0.0
    %861 = vmatpush1.msra.mxu0 0.0
    %862 = vmatprep.subr.mxu0 0.0
    %863 = vmatpush1.msra.mxu0 0.0
    %864 = vmatprep.subr.mxu0 0.0
    %865 = vmatpush1.msra.mxu0 0.0
    %866 = vmatprep.subr.mxu0 0.0
    %867 = vmatpush1.msra.mxu0 0.0
    %868 = vmatprep.subr.mxu0 0.0
    %869 = vmatpush1.msra.mxu0 0.0
    %870 = vmatprep.subr.mxu0 0.0
    %871 = vmatpush1.msra.mxu0 0.0
    %872 = vmatprep.subr.mxu0 0.0
    %873 = vmatpush1.msra.mxu0 0.0
    %874 = vmatprep.subr.mxu0 0.0
    %875 = vmatpush1.msra.mxu0 0.0
    %876 = vmatprep.subr.mxu0 0.0
    %877 = vmatpush1.msra.mxu0 0.0
    %878 = vmatprep.subr.mxu0 0.0
    %879 = vmatpush1.msra.mxu0 0.0
    %880 = vmatprep.subr.mxu0 0.0
    %881 = vmatpush1.msra.mxu0 0.0
    %882 = vmatprep.subr.mxu0 0.0
    %883 = vmatpush1.msra.mxu0 0.0
    %884 = vmatprep.subr.mxu0 0.0
    %885 = vmatpush1.msra.mxu0 0.0
    %886 = vmatprep.subr.mxu0 0.0
    %887 = vmatpush1.msra.mxu0 0.0
    %888 = vmatprep.subr.mxu0 0.0
    %889 = vmatpush1.msra.mxu0 0.0
    %890 = vmatprep.subr.mxu0 0.0
    %891 = vmatpush1.msra.mxu0 0.0
    %892 = vmatprep.subr.mxu0 0.0
    %893 = vmatpush1.msra.mxu0 0.0
    %894 = vmatprep.subr.mxu0 0.0
    %895 = vmatpush1.msra.mxu0 0.0
    %896 = vmatprep.subr.mxu0 0.0
    %897 = vmatpush1.msra.mxu0 0.0
    %898 = vmatprep.subr.mxu0 0.0
    %899 = vmatpush1.msra.mxu0 0.0
    %900 = vmatprep.subr.mxu0 0.0
    %901 = vmatpush1.msra.mxu0 0.0
    %902 = vmatprep.subr.mxu0 0.0
    %903 = vmatpush1.msra.mxu0 0.0
    %904 = vmatprep.subr.mxu0 0.0
    %905 = vmatpush1.msra.mxu0 0.0
    %906 = vmatprep.subr.mxu0 0.0
    %907 = vmatpush1.msra.mxu0 0.0
    %908 = vmatprep.subr.mxu0 0.0
    %909 = vmatpush1.msra.mxu0 0.0
    %910 = vmatprep.mubr.f32.mxu0 0.0
    %911 = vmatmul.mubr.f32.gmra.mrb[0].mxu0 %v835
    %v912 = vpop.f32.mrb[0].mxu0
    %v913 = vadd.f32 0.0, %v912
    %v914 = vpop.f32.mrb[0].mxu0
    %915 = vmatprep.mubr.f32.mxu0 0.0
    %916 = vmatmul.mubr.f32.gmra.mrb[0].mxu0 %v838
    %v917 = vpop.f32.mrb[0].mxu0
    %v918 = vadd.f32 0.0, %v917
    %v919 = vpop.f32.mrb[0].mxu0
    %920 = vmatprep.mubr.f32.mxu0 0.0
    %921 = vmatmul.mubr.f32.gmra.mrb[0].mxu0 %v841
    %v922 = vpop.f32.mrb[0].mxu0
    %v923 = vadd.f32 0.0, %v922
    %v924 = vpop.f32.mrb[0].mxu0
    %925 = vmatprep.mubr.f32.mxu0 0.0
    %926 = vmatmul.mubr.f32.gmra.mrb[0].mxu0 %v844
    %v927 = vpop.f32.mrb[0].mxu0
    %v928 = vadd.f32 0.0, %v927
    %v929 = vpop.f32.mrb[0].mxu0
    %930 = vdwg.mxu0
    %v931 = vld [vmem:[%s12] sm:$0x3]
    %v932 = vmul.f32 %v815, %v913
    %v933 = vmul.f32 %v820, %v918
    %v934 = vmul.f32 %v825, %v923
    %v935 = vmul.f32 %v830, %v928
    %vm936 = vcmask 244736
    %v938 = vsel %vm936, %v931, 0
    %v941 = vsel %vm91, %v935, 0
    %943 = vmatprep.subr.mxu0 0.0
    %944 = vmatpush1.msra.mxu0 %v932
    %945 = vmatprep.subr.mxu0 0.0
    %946 = vmatpush1.msra.mxu0 %v933
    %947 = vmatprep.subr.mxu0 0.0
    %948 = vmatpush1.msra.mxu0 %v934
    %949 = vmatprep.subr.mxu0 0.0
    %950 = vmatpush1.msra.mxu0 %v941
    %951 = vmatprep.subr.mxu0 0.0
    %952 = vmatpush1.msra.mxu0 0.0
    %953 = vmatprep.subr.mxu0 0.0
    %954 = vmatpush1.msra.mxu0 0.0
    %955 = vmatprep.subr.mxu0 0.0
    %956 = vmatpush1.msra.mxu0 0.0
    %957 = vmatprep.subr.mxu0 0.0
    %958 = vmatpush1.msra.mxu0 0.0
    %959 = vmatprep.subr.mxu0 0.0
    %960 = vmatpush1.msra.mxu0 0.0
    %961 = vmatprep.subr.mxu0 0.0
    %962 = vmatpush1.msra.mxu0 0.0
    %963 = vmatprep.subr.mxu0 0.0
    %964 = vmatpush1.msra.mxu0 0.0
    %965 = vmatprep.subr.mxu0 0.0
    %966 = vmatpush1.msra.mxu0 0.0
    %967 = vmatprep.subr.mxu0 0.0
    %968 = vmatpush1.msra.mxu0 0.0
    %969 = vmatprep.subr.mxu0 0.0
    %970 = vmatpush1.msra.mxu0 0.0
    %971 = vmatprep.subr.mxu0 0.0
    %972 = vmatpush1.msra.mxu0 0.0
    %973 = vmatprep.subr.mxu0 0.0
    %974 = vmatpush1.msra.mxu0 0.0
    %975 = vmatprep.subr.mxu0 0.0
    %976 = vmatpush1.msra.mxu0 0.0
    %977 = vmatprep.subr.mxu0 0.0
    %978 = vmatpush1.msra.mxu0 0.0
    %979 = vmatprep.subr.mxu0 0.0
    %980 = vmatpush1.msra.mxu0 0.0
    %981 = vmatprep.subr.mxu0 0.0
    %982 = vmatpush1.msra.mxu0 0.0
    %983 = vmatprep.subr.mxu0 0.0
    %984 = vmatpush1.msra.mxu0 0.0
    %985 = vmatprep.subr.mxu0 0.0
    %986 = vmatpush1.msra.mxu0 0.0
    %987 = vmatprep.subr.mxu0 0.0
    %988 = vmatpush1.msra.mxu0 0.0
    %989 = vmatprep.subr.mxu0 0.0
    %990 = vmatpush1.msra.mxu0 0.0
    %991 = vmatprep.subr.mxu0 0.0
    %992 = vmatpush1.msra.mxu0 0.0
    %993 = vmatprep.subr.mxu0 0.0
    %994 = vmatpush1.msra.mxu0 0.0
    %995 = vmatprep.subr.mxu0 0.0
    %996 = vmatpush1.msra.mxu0 0.0
    %997 = vmatprep.subr.mxu0 0.0
    %998 = vmatpush1.msra.mxu0 0.0
    %999 = vmatprep.subr.mxu0 0.0
    %1000 = vmatpush1.msra.mxu0 0.0
    %1001 = vmatprep.subr.mxu0 0.0
    %1002 = vmatpush1.msra.mxu0 0.0
    %1003 = vmatprep.subr.mxu0 0.0
    %1004 = vmatpush1.msra.mxu0 0.0
    %1005 = vmatprep.subr.mxu0 0.0
    %1006 = vmatpush1.msra.mxu0 0.0
    %1007 = vmatprep.mubr.f32.mxu0 0.0
    %1008 = vmatmul.mubr.f32.gmra.mrb[0].mxu0 %v938
    %v1009 = vpop.f32.mrb[0].mxu0
    %v1010 = vadd.f32 0.0, %v1009
    %v1011 = vpop.f32.mrb[0].mxu0
    %1012 = vdwg.mxu0
    %v1013 = vld [vmem:[%s13] sm:$0xff]
    %v1014 = vld [vmem:[%s13 + $0x8] sm:$0xff]
    %v1015 = vld [vmem:[%s13 + $0x10] sm:$0xff]
    %v1016 = vld [vmem:[%s13 + $0x18] sm:$0xff]
    %v1017 = vld [vmem:[%s13 + $0x20] sm:$0xff]
    %v1018 = vld [vmem:[%s13 + $0x28] sm:$0xff]
    %v1019 = vld [vmem:[%s13 + $0x30] sm:$0xff]
    %v1020 = vld [vmem:[%s13 + $0x38] sm:$0xff]
    %v1021 = vld [vmem:[%s14] sm:$0x1]
    %v1023 = vlaneseq
    %v1024 = vshrl.u32 %v1023, 7
    %v1025 = vsub.s32 0, %v1024
    %v1026 = vrot.slane %v1021, %v1025
    %v1029 = vsel %vm561, %v1010, 0
    %1031 = vmatprep.subr.mxu0 0.0
    %1032 = vmatpush1.msra.mxu0 %v1013
    %1033 = vmatprep.subr.mxu0 0.0
    %1034 = vmatpush1.msra.mxu0 %v1014
    %1035 = vmatprep.subr.mxu0 0.0
    %1036 = vmatpush1.msra.mxu0 %v1015
    %1037 = vmatprep.subr.mxu0 0.0
    %1038 = vmatpush1.msra.mxu0 %v1016
    %1039 = vmatprep.subr.mxu0 0.0
    %1040 = vmatpush1.msra.mxu0 %v1017
    %1041 = vmatprep.subr.mxu0 0.0
    %1042 = vmatpush1.msra.mxu0 %v1018
    %1043 = vmatprep.subr.mxu0 0.0
    %1044 = vmatpush1.msra.mxu0 %v1019
    %1045 = vmatprep.subr.mxu0 0.0
    %1046 = vmatpush1.msra.mxu0 %v1020
    %1047 = vmatprep.subr.mxu0 0.0
    %1048 = vmatpush1.msra.mxu0 0.0
    %1049 = vmatprep.subr.mxu0 0.0
    %1050 = vmatpush1.msra.mxu0 0.0
    %1051 = vmatprep.subr.mxu0 0.0
    %1052 = vmatpush1.msra.mxu0 0.0
    %1053 = vmatprep.subr.mxu0 0.0
    %1054 = vmatpush1.msra.mxu0 0.0
    %1055 = vmatprep.subr.mxu0 0.0
    %1056 = vmatpush1.msra.mxu0 0.0
    %1057 = vmatprep.subr.mxu0 0.0
    %1058 = vmatpush1.msra.mxu0 0.0
    %1059 = vmatprep.subr.mxu0 0.0
    %1060 = vmatpush1.msra.mxu0 0.0
    %1061 = vmatprep.subr.mxu0 0.0
    %1062 = vmatpush1.msra.mxu0 0.0
    %1063 = vmatprep.subr.mxu0 0.0
    %1064 = vmatpush1.msra.mxu0 0.0
    %1065 = vmatprep.subr.mxu0 0.0
    %1066 = vmatpush1.msra.mxu0 0.0
    %1067 = vmatprep.subr.mxu0 0.0
    %1068 = vmatpush1.msra.mxu0 0.0
    %1069 = vmatprep.subr.mxu0 0.0
    %1070 = vmatpush1.msra.mxu0 0.0
    %1071 = vmatprep.subr.mxu0 0.0
    %1072 = vmatpush1.msra.mxu0 0.0
    %1073 = vmatprep.subr.mxu0 0.0
    %1074 = vmatpush1.msra.mxu0 0.0
    %1075 = vmatprep.subr.mxu0 0.0
    %1076 = vmatpush1.msra.mxu0 0.0
    %1077 = vmatprep.subr.mxu0 0.0
    %1078 = vmatpush1.msra.mxu0 0.0
    %1079 = vmatprep.subr.mxu0 0.0
    %1080 = vmatpush1.msra.mxu0 0.0
    %1081 = vmatprep.subr.mxu0 0.0
    %1082 = vmatpush1.msra.mxu0 0.0
    %1083 = vmatprep.subr.mxu0 0.0
    %1084 = vmatpush1.msra.mxu0 0.0
    %1085 = vmatprep.subr.mxu0 0.0
    %1086 = vmatpush1.msra.mxu0 0.0
    %1087 = vmatprep.subr.mxu0 0.0
    %1088 = vmatpush1.msra.mxu0 0.0
    %1089 = vmatprep.subr.mxu0 0.0
    %1090 = vmatpush1.msra.mxu0 0.0
    %1091 = vmatprep.subr.mxu0 0.0
    %1092 = vmatpush1.msra.mxu0 0.0
    %1093 = vmatprep.subr.mxu0 0.0
    %1094 = vmatpush1.msra.mxu0 0.0
    %1095 = vmatprep.mubr.f32.mxu0 0.0
    %1096 = vmatmul.mubr.f32.gmra.mrb[0].mxu0 %v1029
    %v1097 = vpop.f32.mrb[0].mxu0
    %v1098 = vadd.f32 %v1026, %v1097
    %v1099 = vpop.f32.mrb[0].mxu0
    %1100 = vdwg.mxu0
    %v1101 = vmax.f32 %v1098, 0.0
    %v1102 = vld [vmem:[%s15] sm:$0xff]
    %v1103 = vld [vmem:[%s15 + $0x8] sm:$0xff]
    %v1104 = vld [vmem:[%s15 + $0x10] sm:$0xff]
    %v1105 = vld [vmem:[%s15 + $0x18] sm:$0xff]
    %v1106 = vld [vmem:[%s16] sm:$0x1]
    %v1108 = vlaneseq
    %v1109 = vshrl.u32 %v1108, 7
    %v1110 = vsub.s32 0, %v1109
    %v1111 = vrot.slane %v1106, %v1110
    %v1114 = vsel %vm444, %v1101, 0
    %1116 = vmatprep.subr.mxu0 0.0
    %1117 = vmatpush1.msra.mxu0 %v1102
    %1118 = vmatprep.subr.mxu0 0.0
    %1119 = vmatpush1.msra.mxu0 %v1103
    %1120 = vmatprep.subr.mxu0 0.0
    %1121 = vmatpush1.msra.mxu0 %v1104
    %1122 = vmatprep.subr.mxu0 0.0
    %1123 = vmatpush1.msra.mxu0 %v1105
    %1124 = vmatprep.subr.mxu0 0.0
    %1125 = vmatpush1.msra.mxu0 0.0
    %1126 = vmatprep.subr.mxu0 0.0
    %1127 = vmatpush1.msra.mxu0 0.0
    %1128 = vmatprep.subr.mxu0 0.0
    %1129 = vmatpush1.msra.mxu0 0.0
    %1130 = vmatprep.subr.mxu0 0.0
    %1131 = vmatpush1.msra.mxu0 0.0
    %1132 = vmatprep.subr.mxu0 0.0
    %1133 = vmatpush1.msra.mxu0 0.0
    %1134 = vmatprep.subr.mxu0 0.0
    %1135 = vmatpush1.msra.mxu0 0.0
    %1136 = vmatprep.subr.mxu0 0.0
    %1137 = vmatpush1.msra.mxu0 0.0
    %1138 = vmatprep.subr.mxu0 0.0
    %1139 = vmatpush1.msra.mxu0 0.0
    %1140 = vmatprep.subr.mxu0 0.0
    %1141 = vmatpush1.msra.mxu0 0.0
    %1142 = vmatprep.subr.mxu0 0.0
    %1143 = vmatpush1.msra.mxu0 0.0
    %1144 = vmatprep.subr.mxu0 0.0
    %1145 = vmatpush1.msra.mxu0 0.0
    %1146 = vmatprep.subr.mxu0 0.0
    %1147 = vmatpush1.msra.mxu0 0.0
    %1148 = vmatprep.subr.mxu0 0.0
    %1149 = vmatpush1.msra.mxu0 0.0
    %1150 = vmatprep.subr.mxu0 0.0
    %1151 = vmatpush1.msra.mxu0 0.0
    %1152 = vmatprep.subr.mxu0 0.0
    %1153 = vmatpush1.msra.mxu0 0.0
    %1154 = vmatprep.subr.mxu0 0.0
    %1155 = vmatpush1.msra.mxu0 0.0
    %1156 = vmatprep.subr.mxu0 0.0
    %1157 = vmatpush1.msra.mxu0 0.0
    %1158 = vmatprep.subr.mxu0 0.0
    %1159 = vmatpush1.msra.mxu0 0.0
    %1160 = vmatprep.subr.mxu0 0.0
    %1161 = vmatpush1.msra.mxu0 0.0
    %1162 = vmatprep.subr.mxu0 0.0
    %1163 = vmatpush1.msra.mxu0 0.0
    %1164 = vmatprep.subr.mxu0 0.0
    %1165 = vmatpush1.msra.mxu0 0.0
    %1166 = vmatprep.subr.mxu0 0.0
    %1167 = vmatpush1.msra.mxu0 0.0
    %1168 = vmatprep.subr.mxu0 0.0
    %1169 = vmatpush1.msra.mxu0 0.0
    %1170 = vmatprep.subr.mxu0 0.0
    %1171 = vmatpush1.msra.mxu0 0.0
    %1172 = vmatprep.subr.mxu0 0.0
    %1173 = vmatpush1.msra.mxu0 0.0
    %1174 = vmatprep.subr.mxu0 0.0
    %1175 = vmatpush1.msra.mxu0 0.0
    %1176 = vmatprep.subr.mxu0 0.0
    %1177 = vmatpush1.msra.mxu0 0.0
    %1178 = vmatprep.subr.mxu0 0.0
    %1179 = vmatpush1.msra.mxu0 0.0
    %1180 = vmatprep.mubr.f32.mxu0 0.0
    %1181 = vmatmul.mubr.f32.gmra.mrb[0].mxu0 %v1114
    %v1182 = vpop.f32.mrb[0].mxu0
    %v1183 = vadd.f32 %v1111, %v1182
    %v1184 = vpop.f32.mrb[0].mxu0
    %1185 = vdwg.mxu0
    %v1186 = vmax.f32 %v1183, 0.0
    %v1187 = vld [vmem:[%s17] sm:$0xff]
    %v1188 = vld [vmem:[%s18] sm:$0x1]
    %v1190 = vlaneseq
    %v1191 = vshrl.u32 %v1190, 7
    %v1192 = vsub.s32 0, %v1191
    %v1193 = vrot.slane %v1188, %v1192
    %v1196 = vsel %vm125, %v1186, 0
    %1198 = vmatprep.subr.mxu0 0.0
    %1199 = vmatpush1.msra.mxu0 %v1187
    %1200 = vmatprep.subr.mxu0 0.0
    %1201 = vmatpush1.msra.mxu0 0.0
    %1202 = vmatprep.subr.mxu0 0.0
    %1203 = vmatpush1.msra.mxu0 0.0
    %1204 = vmatprep.subr.mxu0 0.0
    %1205 = vmatpush1.msra.mxu0 0.0
    %1206 = vmatprep.subr.mxu0 0.0
    %1207 = vmatpush1.msra.mxu0 0.0
    %1208 = vmatprep.subr.mxu0 0.0
    %1209 = vmatpush1.msra.mxu0 0.0
    %1210 = vmatprep.subr.mxu0 0.0
    %1211 = vmatpush1.msra.mxu0 0.0
    %1212 = vmatprep.subr.mxu0 0.0
    %1213 = vmatpush1.msra.mxu0 0.0
    %1214 = vmatprep.subr.mxu0 0.0
    %1215 = vmatpush1.msra.mxu0 0.0
    %1216 = vmatprep.subr.mxu0 0.0
    %1217 = vmatpush1.msra.mxu0 0.0
    %1218 = vmatprep.subr.mxu0 0.0
    %1219 = vmatpush1.msra.mxu0 0.0
    %1220 = vmatprep.subr.mxu0 0.0
    %1221 = vmatpush1.msra.mxu0 0.0
    %1222 = vmatprep.subr.mxu0 0.0
    %1223 = vmatpush1.msra.mxu0 0.0
    %1224 = vmatprep.subr.mxu0 0.0
    %1225 = vmatpush1.msra.mxu0 0.0
    %1226 = vmatprep.subr.mxu0 0.0
    %1227 = vmatpush1.msra.mxu0 0.0
    %1228 = vmatprep.subr.mxu0 0.0
    %1229 = vmatpush1.msra.mxu0 0.0
    %1230 = vmatprep.subr.mxu0 0.0
    %1231 = vmatpush1.msra.mxu0 0.0
    %1232 = vmatprep.subr.mxu0 0.0
    %1233 = vmatpush1.msra.mxu0 0.0
    %1234 = vmatprep.subr.mxu0 0.0
    %1235 = vmatpush1.msra.mxu0 0.0
    %1236 = vmatprep.subr.mxu0 0.0
    %1237 = vmatpush1.msra.mxu0 0.0
    %1238 = vmatprep.subr.mxu0 0.0
    %1239 = vmatpush1.msra.mxu0 0.0
    %1240 = vmatprep.subr.mxu0 0.0
    %1241 = vmatpush1.msra.mxu0 0.0
    %1242 = vmatprep.subr.mxu0 0.0
    %1243 = vmatpush1.msra.mxu0 0.0
    %1244 = vmatprep.subr.mxu0 0.0
    %1245 = vmatpush1.msra.mxu0 0.0
    %1246 = vmatprep.subr.mxu0 0.0
    %1247 = vmatpush1.msra.mxu0 0.0
    %1248 = vmatprep.subr.mxu0 0.0
    %1249 = vmatpush1.msra.mxu0 0.0
    %1250 = vmatprep.subr.mxu0 0.0
    %1251 = vmatpush1.msra.mxu0 0.0
    %1252 = vmatprep.subr.mxu0 0.0
    %1253 = vmatpush1.msra.mxu0 0.0
    %1254 = vmatprep.subr.mxu0 0.0
    %1255 = vmatpush1.msra.mxu0 0.0
    %1256 = vmatprep.subr.mxu0 0.0
    %1257 = vmatpush1.msra.mxu0 0.0
    %1258 = vmatprep.subr.mxu0 0.0
    %1259 = vmatpush1.msra.mxu0 0.0
    %1260 = vmatprep.subr.mxu0 0.0
    %1261 = vmatpush1.msra.mxu0 0.0
    %1262 = vmatprep.mubr.f32.mxu0 0.0
    %1263 = vmatmul.mubr.f32.gmra.mrb[0].mxu0 %v1196
    %v1264 = vpop.f32.mrb[0].mxu0
    %v1265 = vadd.f32 %v1193, %v1264
    %v1266 = vpop.f32.mrb[0].mxu0
    %1267 = vdwg.mxu0
    %vm1268 = vcmask 17408
    %1269 = vst.msk [vmem:[#allocation2] sm:$0x3] %vm1268, %v1265
    // Predicated region
    $region78: #{complor_forward.1} parent=1 // pred_check
      _
    $region79: #{complor_forward.1} parent=1 // pred_check_branch
      %1271 = sbr.rel (0) target = $region81
    $region80: #{complor_forward.1} parent=1 // pred_region
      %s1273 = ssub.s32 32, 32
      %1274 = vsyncadd [#allocation3], %s1273
      %s1276 = sshll.u32 [#allocation2], 4
      %s1277 = int_to_ptr.vmem [resolvable:$true] %s1276
      %1279 = dma.vmem_to_hbm [thread:$0]  %s1277, 32, %s19, [#allocation3]
    $region81: #{complor_forward.1} parent=1 // pred_fallthru
      _
    // Predicated region
    $region82: #{complor_forward.1} parent=1 // pred_check
      _
    $region83: #{complor_forward.1} parent=1 // pred_check_branch
      %1281 = sbr.rel (0) target = $region85
    $region84: #{complor_forward.1} parent=1 // pred_region
      %1282 = dma.done [#allocation3], 32
    $region85: #{complor_forward.1} parent=1 // pred_fallthru
      _
    %1283 = vsyncpa [#allocation3], 1

</llo_original>
